<compile_context>
chip_gen: v7x
topology: tpu7x:2x2x1
jax: 0.10.0
libtpu: 0.0.40
codegen_flags: <defaults>
</compile_context>

<pallas_src>
import functools

import jax
import jax.numpy as jnp
from jax.experimental import pallas as pl
from jax.experimental.pallas import tpu as pltpu

_LANE = 128
_GELU_C = 0.7978845608028654  # sqrt(2/pi)


def _gelu_tanh(x):
    return 0.5 * x * (1.0 + jnp.tanh(_GELU_C * (x + 0.044715 * x * x * x)))


def _round_up(n, m):
    return ((n + m - 1) // m) * m


def _pad2(a, rows, cols):
    r, c = a.shape
    return jnp.pad(a, ((0, rows - r), (0, cols - c)))


def _choose_block(batch, max_block_b):
    """Pick the batch tile. Big tiles amortize the ~0.35us/step overhead, but we
    keep the grid length >= 2 so the parallel axis can shard across both
    TensorCores on v7x (no-op on single-TC v5e/v6e)."""
    b8 = _round_up(batch, 8)
    if b8 >= 16:
        block_b = min(max_block_b, _round_up((b8 + 1) // 2, 8))
    else:
        block_b = b8
    block_b = max(block_b, 8)
    b_p = _round_up(batch, block_b)
    return block_b, b_p


def vae_encoder_kernel(
    x_ref,
    w1_ref, b1_ref, w2_ref, b2_ref,
    wh_ref, bh_ref,
    eps_ref,
    z_ref, kl_ref,
    *, lat_p,
):
    # Layer 1: bf16 MXU operands, f32 accumulate, f32 elementwise.
    h = jnp.dot(x_ref[...], w1_ref[...], preferred_element_type=jnp.float32) + b1_ref[...]
    h = _gelu_tanh(h)                                   # dropout: identity (eval)

    # Layer 2.
    h = jnp.dot(h.astype(jnp.bfloat16), w2_ref[...],
                preferred_element_type=jnp.float32) + b2_ref[...]
    h = _gelu_tanh(h)                                   # dropout: identity (eval)

    # Fused mu / log_sigma head: one (hid2_p, 2*lat_p) matmul, split in-register
    # (lat_p is a multiple of 128, so the split is lane-tile aligned).
    head = jnp.dot(h.astype(jnp.bfloat16), wh_ref[...],
                   preferred_element_type=jnp.float32) + bh_ref[...]
    mu = head[:, :lat_p]
    log_sigma = head[:, lat_p:]
    sigma = jnp.exp(log_sigma)

    eps = eps_ref[...]
    z = mu + sigma * eps
    z_ref[...] = z.astype(z_ref.dtype)

    # kl_i = sum_j [ -log_sigma + 0.5*(z^2 - eps^2) ]
    # Zero-padded latent lanes have mu = log_sigma = eps = 0 -> contribute 0,
    # so summing over the full padded lane width is exact.
    kl_ref[...] = jnp.sum(-log_sigma + 0.5 * (z * z - eps * eps),
                          axis=-1, keepdims=True).astype(kl_ref.dtype)


def prepare_params(params):
    """One-time (outside the hot path): zero-pad all params to lane-dense
    shapes, fuse the mu/log_sigma head, and cast matmul weights to bf16.
    Returns (padded_params, dims) where dims are the real feature sizes."""
    input_size, hidden = params["w1"].shape
    hidden2 = params["w2"].shape[1]
    latent = params["wmu"].shape[1]

    in_p = _round_up(input_size, _LANE)
    hid_p = _round_up(hidden, _LANE)
    hid2_p = _round_up(hidden2, _LANE)
    lat_p = _round_up(latent, _LANE)

    padded = dict(
        w1=_pad2(params["w1"], in_p, hid_p).astype(jnp.bfloat16),
        b1=_pad2(params["b1"], 1, hid_p).astype(jnp.float32),
        w2=_pad2(params["w2"], hid_p, hid2_p).astype(jnp.bfloat16),
        b2=_pad2(params["b2"], 1, hid2_p).astype(jnp.float32),
        w_head=jnp.concatenate(
            [_pad2(params["wmu"], hid2_p, lat_p),
             _pad2(params["wls"], hid2_p, lat_p)], axis=1).astype(jnp.bfloat16),
        b_head=jnp.concatenate(
            [_pad2(params["bmu"], 1, lat_p),
             _pad2(params["bls"], 1, lat_p)], axis=1).astype(jnp.float32),
    )
    dims = (input_size, hidden, hidden2, latent)
    return padded, dims


@functools.partial(jax.jit, static_argnames=("dims", "max_block_b"))
def variational_encoder_forward(x, padded_params, eps, *, dims, max_block_b=256):
    """Runs the VariationalEncoder forward pass in one Pallas kernel.

    padded_params comes from prepare_params (bf16 weights, fused head).
    eps is the N(0,1) reparameterization noise, shape (batch, latent_dim).
    Returns (z, kl) matching the PyTorch module's return value and `self.kl`.
    """
    input_size, hidden, hidden2, latent = dims
    batch = x.shape[0]

    in_p, hid_p = padded_params["w1"].shape
    hid2_p = padded_params["w2"].shape[1]
    lat_p = padded_params["w_head"].shape[1] // 2

    block_b, b_p = _choose_block(batch, max_block_b)
    grid = (b_p // block_b,)

    # Only the per-call activations are padded here; params were padded once.
    x_p = _pad2(x, b_p, in_p).astype(jnp.bfloat16)
    eps_p = _pad2(eps, b_p, lat_p).astype(jnp.float32)

    def batch_map(i):
        return (i, 0)

    def const_map(i):
        return (0, 0)

    in_specs = [
        pl.BlockSpec((block_b, in_p), batch_map),       # x tile (pipelined, bf16)
        pl.BlockSpec((in_p, hid_p), const_map),         # W1 (VMEM-resident, bf16)
        pl.BlockSpec((1, hid_p), const_map),            # b1 (f32)
        pl.BlockSpec((hid_p, hid2_p), const_map),       # W2
        pl.BlockSpec((1, hid2_p), const_map),           # b2
        pl.BlockSpec((hid2_p, 2 * lat_p), const_map),   # [Wmu | Wls] fused head
        pl.BlockSpec((1, 2 * lat_p), const_map),        # [bmu | bls]
        pl.BlockSpec((block_b, lat_p), batch_map),      # eps tile (pipelined, f32)
    ]
    out_specs = (
        pl.BlockSpec((block_b, lat_p), batch_map),      # z
        pl.BlockSpec((block_b, 1), batch_map),          # kl column (tiny writeback)
    )
    out_shape = (
        jax.ShapeDtypeStruct((b_p, lat_p), jnp.float32),
        jax.ShapeDtypeStruct((b_p, 1), jnp.float32),
    )

    # Advisory cost hint computed from REAL (unpadded) dims and real dtypes.
    flops = 2 * batch * (input_size * hidden + hidden * hidden2 + hidden2 * 2 * latent)
    transcendentals = batch * (hidden + hidden2 + latent)
    bytes_accessed = (
        2 * batch * input_size                                            # x (bf16)
        + 2 * (input_size * hidden + hidden * hidden2 + hidden2 * 2 * latent)  # weights (bf16)
        + 4 * (hidden + hidden2 + 2 * latent)                             # biases (f32)
        + 4 * batch * latent                                              # eps
        + 4 * batch * latent                                              # z
        + 4 * batch                                                       # kl
    )

    # Guard the resident-weight strategy against large hidden dims (v7x has
    # only 64 MiB VMEM and a 32 MiB scoped default): only raise the limit when
    # the estimated footprint approaches the default.
    vmem_need = (
        2 * (in_p * hid_p + hid_p * hid2_p + hid2_p * 2 * lat_p)          # bf16 weights
        + 4 * (hid_p + hid2_p + 2 * lat_p)                                # f32 biases
        + 2 * block_b * (2 * in_p + 4 * lat_p + 4 * lat_p + 4)            # double-buffered tiles
    )
    compiler_kwargs = dict(dimension_semantics=("parallel",))
    if vmem_need > (24 << 20):
        compiler_kwargs["vmem_limit_bytes"] = int(min(2 * vmem_need, 112 << 20))

    z_p, kl_p = pl.pallas_call(
        functools.partial(vae_encoder_kernel, lat_p=lat_p),
        grid=grid,
        in_specs=in_specs,
        out_specs=out_specs,
        out_shape=out_shape,
        compiler_params=pltpu.CompilerParams(**compiler_kwargs),
        cost_estimate=pl.CostEstimate(
            flops=flops,
            transcendentals=transcendentals,
            bytes_accessed=bytes_accessed,
        ),
    )(x_p,
      padded_params["w1"], padded_params["b1"],
      padded_params["w2"], padded_params["b2"],
      padded_params["w_head"], padded_params["b_head"],
      eps_p)

    z = z_p[:batch, :latent]
    kl = kl_p[:batch, 0]
    return z, kl


def make_params(key, input_size, hidden_dim, latent_dim):
    """PyTorch-Linear-like init; weights stored transposed, shape (in, out)."""
    hidden_dim2 = round(hidden_dim / 4)

    def linear(k, fan_in, fan_out):
        kw, kb = jax.random.split(k)
        bound = 1.0 / (fan_in ** 0.5)
        w = jax.random.uniform(kw, (fan_in, fan_out), jnp.float32, -bound, bound)
        b = jax.random.uniform(kb, (1, fan_out), jnp.float32, -bound, bound)
        return w, b

    keys = jax.random.split(key, 4)
    w1, b1 = linear(keys[0], input_size, hidden_dim)
    w2, b2 = linear(keys[1], hidden_dim, hidden_dim2)
    wmu, bmu = linear(keys[2], hidden_dim2, latent_dim)
    wls, bls = linear(keys[3], hidden_dim2, latent_dim)
    return dict(w1=w1, b1=b1, w2=w2, b2=b2, wmu=wmu, bmu=bmu, wls=wls, bls=bls)


def reference_forward(x, p, eps):
    """Pure-JAX reference with the same bf16-at-the-MXU-operands numerics and
    the same GELU approximation as the kernel."""
    def mm(a, w):
        return jnp.dot(a.astype(jnp.bfloat16), w.astype(jnp.bfloat16),
                       preferred_element_type=jnp.float32)

    h = _gelu_tanh(mm(x, p["w1"]) + p["b1"])
    h = _gelu_tanh(mm(h, p["w2"]) + p["b2"])
    mu = mm(h, p["wmu"]) + p["bmu"]
    log_sigma = mm(h, p["wls"]) + p["bls"]
    sigma = jnp.exp(log_sigma)
    z = mu + sigma * eps
    kl = jnp.sum(-log_sigma + 0.5 * (z * z - eps * eps), axis=-1)
    return z, kl


if __name__ == "__main__":
    # Small shapes consistent with the module: x is (batch, input_size).
    batch, input_size, hidden_dim, latent_dim = 256, 16, 32, 8

    key = jax.random.PRNGKey(0)
    k_x, k_eps, k_p = jax.random.split(key, 3)
    x = jax.random.normal(k_x, (batch, input_size), dtype=jnp.float32)
    eps = jax.random.normal(k_eps, (batch, latent_dim), dtype=jnp.float32)
    params = make_params(k_p, input_size, hidden_dim, latent_dim)

    padded_params, dims = prepare_params(params)   # one-time padding / bf16 cast

    z, kl = variational_encoder_forward(x, padded_params, eps, dims=dims)
    z, kl = jax.block_until_ready((z, kl))

    ref_z, ref_kl = reference_forward(x, params, eps)
    assert z.shape == (batch, latent_dim)
    assert kl.shape == (batch,)
    assert jnp.allclose(z, ref_z, atol=2e-3, rtol=2e-3)
    assert jnp.allclose(kl, ref_kl, atol=2e-3, rtol=2e-3)

    print("KERNEL_OK")
</pallas_src>

<mosaic_0001>
module attributes {stable_mosaic.version = 11 : i64} {
  func.func @vae_encoder_kernel(%arg0: i32, %arg1: memref<128x128xbf16, #tpu.memory_space<vmem>>, %arg2: memref<128x128xbf16, #tpu.memory_space<vmem>>, %arg3: memref<1x128xf32, #tpu.memory_space<vmem>>, %arg4: memref<128x128xbf16, #tpu.memory_space<vmem>>, %arg5: memref<1x128xf32, #tpu.memory_space<vmem>>, %arg6: memref<128x256xbf16, #tpu.memory_space<vmem>>, %arg7: memref<1x256xf32, #tpu.memory_space<vmem>>, %arg8: memref<128x128xf32, #tpu.memory_space<vmem>>, %arg9: memref<128x128xf32, #tpu.memory_space<vmem>>, %arg10: memref<128x1xf32, #tpu.memory_space<vmem>>) attributes {dimension_semantics = [#tpu.dimension_semantics<parallel>], iteration_bounds = array<i64: 2>, scalar_prefetch = 0 : i64, scratch_operands = 0 : i64, tpu.core_type = #tpu.core_type<tc>, window_params = [{transform_indices = @transform_0, window_bounds = array<i64: 128, 128>}, {pipeline_mode = #tpu.pipeline_mode<synchronous>, transform_indices = @transform_1, window_bounds = array<i64: 128, 128>}, {pipeline_mode = #tpu.pipeline_mode<synchronous>, transform_indices = @transform_2, window_bounds = array<i64: 1, 128>}, {pipeline_mode = #tpu.pipeline_mode<synchronous>, transform_indices = @transform_3, window_bounds = array<i64: 128, 128>}, {pipeline_mode = #tpu.pipeline_mode<synchronous>, transform_indices = @transform_4, window_bounds = array<i64: 1, 128>}, {pipeline_mode = #tpu.pipeline_mode<synchronous>, transform_indices = @transform_5, window_bounds = array<i64: 128, 256>}, {pipeline_mode = #tpu.pipeline_mode<synchronous>, transform_indices = @transform_6, window_bounds = array<i64: 1, 256>}, {transform_indices = @transform_7, window_bounds = array<i64: 128, 128>}, {transform_indices = @transform_8, window_bounds = array<i64: 128, 128>}, {transform_indices = @transform_9, window_bounds = array<i64: 128, 1>}]} {
    %c0 = arith.constant 0 : index
    %c0_0 = arith.constant 0 : index
    %0 = vector.load %arg1[%c0, %c0_0] : memref<128x128xbf16, #tpu.memory_space<vmem>>, vector<128x128xbf16>
    %c0_1 = arith.constant 0 : index
    %c0_2 = arith.constant 0 : index
    %1 = vector.load %arg2[%c0_1, %c0_2] : memref<128x128xbf16, #tpu.memory_space<vmem>>, vector<128x128xbf16>
    %cst = arith.constant dense<0.000000e+00> : vector<128x128xf32>
    %2 = tpu.matmul %0, %1, %cst {dimension_numbers = #tpu.dot_dimension_numbers<[1], [0], [0], [1], [0, 0, 1, 1], [], []>} : vector<128x128xbf16>, vector<128x128xbf16>, vector<128x128xf32> -> vector<128x128xf32>
    %c0_3 = arith.constant 0 : index
    %c0_4 = arith.constant 0 : index
    %3 = vector.load %arg3[%c0_3, %c0_4] : memref<1x128xf32, #tpu.memory_space<vmem>>, vector<1x128xf32>
    %4 = vector.broadcast %3 : vector<1x128xf32> to vector<128x128xf32>
    %5 = arith.addf %2, %4 : vector<128x128xf32>
    %cst_5 = arith.constant 5.000000e-01 : f32
    %6 = vector.broadcast %cst_5 : f32 to vector<128x128xf32>
    %7 = arith.mulf %6, %5 : vector<128x128xf32>
    %cst_6 = arith.constant 4.471500e-02 : f32
    %8 = vector.broadcast %cst_6 : f32 to vector<128x128xf32>
    %9 = arith.mulf %8, %5 : vector<128x128xf32>
    %10 = arith.mulf %9, %5 : vector<128x128xf32>
    %11 = arith.mulf %10, %5 : vector<128x128xf32>
    %12 = arith.addf %5, %11 : vector<128x128xf32>
    %cst_7 = arith.constant 0.797884583 : f32
    %13 = vector.broadcast %cst_7 : f32 to vector<128x128xf32>
    %14 = arith.mulf %13, %12 : vector<128x128xf32>
    %15 = math.tanh %14 : vector<128x128xf32>
    %cst_8 = arith.constant 1.000000e+00 : f32
    %16 = vector.broadcast %cst_8 : f32 to vector<128x128xf32>
    %17 = arith.addf %16, %15 : vector<128x128xf32>
    %18 = arith.mulf %7, %17 : vector<128x128xf32>
    %19 = arith.truncf %18 : vector<128x128xf32> to vector<128x128xbf16>
    %c0_9 = arith.constant 0 : index
    %c0_10 = arith.constant 0 : index
    %20 = vector.load %arg4[%c0_9, %c0_10] : memref<128x128xbf16, #tpu.memory_space<vmem>>, vector<128x128xbf16>
    %cst_11 = arith.constant dense<0.000000e+00> : vector<128x128xf32>
    %21 = tpu.matmul %19, %20, %cst_11 {dimension_numbers = #tpu.dot_dimension_numbers<[1], [0], [0], [1], [0, 0, 1, 1], [], []>} : vector<128x128xbf16>, vector<128x128xbf16>, vector<128x128xf32> -> vector<128x128xf32>
    %c0_12 = arith.constant 0 : index
    %c0_13 = arith.constant 0 : index
    %22 = vector.load %arg5[%c0_12, %c0_13] : memref<1x128xf32, #tpu.memory_space<vmem>>, vector<1x128xf32>
    %23 = vector.broadcast %22 : vector<1x128xf32> to vector<128x128xf32>
    %24 = arith.addf %21, %23 : vector<128x128xf32>
    %cst_14 = arith.constant 5.000000e-01 : f32
    %25 = vector.broadcast %cst_14 : f32 to vector<128x128xf32>
    %26 = arith.mulf %25, %24 : vector<128x128xf32>
    %cst_15 = arith.constant 4.471500e-02 : f32
    %27 = vector.broadcast %cst_15 : f32 to vector<128x128xf32>
    %28 = arith.mulf %27, %24 : vector<128x128xf32>
    %29 = arith.mulf %28, %24 : vector<128x128xf32>
    %30 = arith.mulf %29, %24 : vector<128x128xf32>
    %31 = arith.addf %24, %30 : vector<128x128xf32>
    %cst_16 = arith.constant 0.797884583 : f32
    %32 = vector.broadcast %cst_16 : f32 to vector<128x128xf32>
    %33 = arith.mulf %32, %31 : vector<128x128xf32>
    %34 = math.tanh %33 : vector<128x128xf32>
    %cst_17 = arith.constant 1.000000e+00 : f32
    %35 = vector.broadcast %cst_17 : f32 to vector<128x128xf32>
    %36 = arith.addf %35, %34 : vector<128x128xf32>
    %37 = arith.mulf %26, %36 : vector<128x128xf32>
    %38 = arith.truncf %37 : vector<128x128xf32> to vector<128x128xbf16>
    %c0_18 = arith.constant 0 : index
    %c0_19 = arith.constant 0 : index
    %39 = vector.load %arg6[%c0_18, %c0_19] : memref<128x256xbf16, #tpu.memory_space<vmem>>, vector<128x256xbf16>
    %cst_20 = arith.constant dense<0.000000e+00> : vector<128x256xf32>
    %40 = tpu.matmul %38, %39, %cst_20 {dimension_numbers = #tpu.dot_dimension_numbers<[1], [0], [0], [1], [0, 0, 1, 1], [], []>} : vector<128x128xbf16>, vector<128x256xbf16>, vector<128x256xf32> -> vector<128x256xf32>
    %c0_21 = arith.constant 0 : index
    %c0_22 = arith.constant 0 : index
    %41 = vector.load %arg7[%c0_21, %c0_22] : memref<1x256xf32, #tpu.memory_space<vmem>>, vector<1x256xf32>
    %42 = vector.broadcast %41 : vector<1x256xf32> to vector<128x256xf32>
    %43 = arith.addf %40, %42 : vector<128x256xf32>
    %44 = vector.extract_strided_slice %43 {offsets = [0, 0], sizes = [128, 128], strides = [1, 1]} : vector<128x256xf32> to vector<128x128xf32>
    %45 = vector.extract_strided_slice %43 {offsets = [0, 128], sizes = [128, 128], strides = [1, 1]} : vector<128x256xf32> to vector<128x128xf32>
    %46 = math.exp %45 : vector<128x128xf32>
    %c0_23 = arith.constant 0 : index
    %c0_24 = arith.constant 0 : index
    %47 = vector.load %arg8[%c0_23, %c0_24] : memref<128x128xf32, #tpu.memory_space<vmem>>, vector<128x128xf32>
    %48 = arith.mulf %46, %47 : vector<128x128xf32>
    %49 = arith.addf %44, %48 : vector<128x128xf32>
    %c0_25 = arith.constant 0 : index
    %c0_26 = arith.constant 0 : index
    %50 = vector.load %arg9[%c0_25, %c0_26] : memref<128x128xf32, #tpu.memory_space<vmem>>, vector<128x128xf32>
    tpu.vector_store %arg9[%c0_25, %c0_26], %49 {strides = array<i32>} : memref<128x128xf32, #tpu.memory_space<vmem>>, vector<128x128xf32>,
    %cst_27 = arith.constant 0.000000e+00 : f32
    %51 = vector.broadcast %cst_27 : f32 to vector<128x128xf32>
    %52 = arith.subf %51, %45 : vector<128x128xf32>
    %53 = arith.mulf %49, %49 : vector<128x128xf32>
    %54 = arith.mulf %47, %47 : vector<128x128xf32>
    %55 = arith.subf %53, %54 : vector<128x128xf32>
    %cst_28 = arith.constant 5.000000e-01 : f32
    %56 = vector.broadcast %cst_28 : f32 to vector<128x128xf32>
    %57 = arith.mulf %56, %55 : vector<128x128xf32>
    %58 = arith.addf %52, %57 : vector<128x128xf32>
    %cst_29 = arith.constant dense<0.000000e+00> : vector<128xf32>
    %59 = vector.multi_reduction <add>, %58, %cst_29 [1] : vector<128x128xf32> to vector<128xf32>
    %60 = vector.shape_cast %59 : vector<128xf32> to vector<128x1xf32>
    %c0_30 = arith.constant 0 : index
    %c0_31 = arith.constant 0 : index
    %61 = vector.load %arg10[%c0_30, %c0_31] : memref<128x1xf32, #tpu.memory_space<vmem>>, vector<128x1xf32>
    tpu.vector_store %arg10[%c0_30, %c0_31], %60 {strides = array<i32>} : memref<128x1xf32, #tpu.memory_space<vmem>>, vector<128x1xf32>,
    return
  }
  func.func @transform_0(%arg0: i32) -> (i32, i32) {
    %c0_i32 = arith.constant 0 : i32
    %c0_i32_0 = arith.constant 0 : i32
    return %arg0, %c0_i32 : i32, i32
  }
  func.func @transform_1(%arg0: i32) -> (i32, i32) {
    %c0_i32 = arith.constant 0 : i32
    %c0_i32_0 = arith.constant 0 : i32
    %c0_i32_1 = arith.constant 0 : i32
    return %c0_i32, %c0_i32_0 : i32, i32
  }
  func.func @transform_2(%arg0: i32) -> (i32, i32) {
    %c0_i32 = arith.constant 0 : i32
    %c0_i32_0 = arith.constant 0 : i32
    %c0_i32_1 = arith.constant 0 : i32
    return %c0_i32, %c0_i32_0 : i32, i32
  }
  func.func @transform_3(%arg0: i32) -> (i32, i32) {
    %c0_i32 = arith.constant 0 : i32
    %c0_i32_0 = arith.constant 0 : i32
    %c0_i32_1 = arith.constant 0 : i32
    return %c0_i32, %c0_i32_0 : i32, i32
  }
  func.func @transform_4(%arg0: i32) -> (i32, i32) {
    %c0_i32 = arith.constant 0 : i32
    %c0_i32_0 = arith.constant 0 : i32
    %c0_i32_1 = arith.constant 0 : i32
    return %c0_i32, %c0_i32_0 : i32, i32
  }
  func.func @transform_5(%arg0: i32) -> (i32, i32) {
    %c0_i32 = arith.constant 0 : i32
    %c0_i32_0 = arith.constant 0 : i32
    %c0_i32_1 = arith.constant 0 : i32
    return %c0_i32, %c0_i32_0 : i32, i32
  }
  func.func @transform_6(%arg0: i32) -> (i32, i32) {
    %c0_i32 = arith.constant 0 : i32
    %c0_i32_0 = arith.constant 0 : i32
    %c0_i32_1 = arith.constant 0 : i32
    return %c0_i32, %c0_i32_0 : i32, i32
  }
  func.func @transform_7(%arg0: i32) -> (i32, i32) {
    %c0_i32 = arith.constant 0 : i32
    %c0_i32_0 = arith.constant 0 : i32
    return %arg0, %c0_i32 : i32, i32
  }
  func.func @transform_8(%arg0: i32) -> (i32, i32) {
    %c0_i32 = arith.constant 0 : i32
    %c0_i32_0 = arith.constant 0 : i32
    return %arg0, %c0_i32 : i32, i32
  }
  func.func @transform_9(%arg0: i32) -> (i32, i32) {
    %c0_i32 = arith.constant 0 : i32
    %c0_i32_0 = arith.constant 0 : i32
    return %arg0, %c0_i32 : i32, i32
  }
}

</mosaic_0001>

<llo_original>
// kernel: variational_encoder_forward.1
$region0: #{variational_encoder_forward.1}
  #allocation0 [shape = 'u32[]', space=smem, size = 0x4, offset = 0x4, fixed_abs, tag = 'smem constant byte address 0x4 - core index']
  #allocation1 [shape = 'u32[144,128]{1,0:T(1,128)}', space=vmem, size = 0x12000, scoped, tag = 'internal scratch']
  %s0 = inlined_call_operand.vmem [shape: bf16[256,128], index: 0, kind: input, shape index: {}]
  %s1 = inlined_call_operand.vmem [shape: bf16[128,128], index: 1, kind: input, shape index: {}]
  %s2 = inlined_call_operand.vmem [shape: f32[1,128], index: 2, kind: input, shape index: {}]
  %s3 = inlined_call_operand.vmem [shape: bf16[128,128], index: 3, kind: input, shape index: {}]
  %s4 = inlined_call_operand.vmem [shape: f32[1,128], index: 4, kind: input, shape index: {}]
  %s5 = inlined_call_operand.vmem [shape: bf16[128,256], index: 5, kind: input, shape index: {}]
  %s6 = inlined_call_operand.vmem [shape: f32[1,256], index: 6, kind: input, shape index: {}]
  %s7 = inlined_call_operand.vmem [shape: f32[256,128], index: 7, kind: input, shape index: {}]
  %s8 = inlined_call_operand.vmem [shape: f32[256,128], index: 8, kind: output, shape index: {0}]
  %s9 = inlined_call_operand.vmem [shape: f32[256,1], index: 9, kind: output, shape index: {1}]
  %10 = xla_tuple %s8, %s9
  %s11 = sld [smem:[#allocation0]]
  $region73: #{variational_encoder_forward.1} parent=0
    _
  %s13 = ssub.s32 1, %s11
  %s14 = scalar_select 0, %s13, %s11
  loop: start=0, step=1, limit=4
  $region2: #{variational_encoder_forward.1} parent=0 // loop_pre_header
    _
  $region3: #{variational_encoder_forward.1} parent=0 // loop_header
    %s16 = sphi 0, %s20
    %p17 = scmp.ge.s32.totalorder %s16, 4
    %s26 = sphi 0, %s28
    %s29 = sphi 0, %s26
    %s30 = sphi 0, %s29
    %s46 = sphi 0, %s30
    %s50 = sphi 0, %s50
    %s52 = sphi 0, %s50
    %s53 = sphi 0, %s52
    %s67 = sphi 0, %s53
    %s71 = sphi 0, %s71
    %s73 = sphi 0, %s71
    %s74 = sphi 0, %s73
    %s88 = sphi 0, %s74
    %s92 = sphi 0, %s92
    %s94 = sphi 0, %s92
    %s95 = sphi 0, %s94
    %s109 = sphi 0, %s95
    %s113 = sphi 0, %s113
    %s115 = sphi 0, %s113
    %s116 = sphi 0, %s115
    %s130 = sphi 0, %s116
    %s134 = sphi 0, %s134
    %s136 = sphi 0, %s134
    %s137 = sphi 0, %s136
    %s151 = sphi 0, %s137
    %s155 = sphi 0, %s155
    %s157 = sphi 0, %s155
    %s158 = sphi 0, %s157
    %s172 = sphi 0, %s158
    %s178 = sphi 0, %s180
    %s181 = sphi 0, %s178
    %s182 = sphi 0, %s181
    %s198 = sphi 0, %s182
    %s204 = sphi 0, %s206
    %s207 = sphi 0, %s204
    %s208 = sphi 0, %s207
    %s224 = sphi 0, %s208
    %s230 = sphi 0, %s232
    %s233 = sphi 0, %s230
    %s234 = sphi 0, %s233
    %s250 = sphi 0, %s234
  $region4: #{variational_encoder_forward.1} parent=0 // loop_header_branch
    %19 = sbr.rel (%p17) target = $region8
  $region5: #{variational_encoder_forward.1} parent=0 // loop_body
    %s21 = ssub.s32 %s16, 1
    %s22 = ssub.s32 %s16, 2
    %s23 = sadd.s32 %s16, 1
    %s24 = ssub.s32 %s16, %s23
    %p25 = scmp.eq.s32.totalorder %s24, 0
    %s27 = sadd.s32 %s26, 1
    %s28 = scalar_select %p25, %s26, %s27
    %p31 = pneg %p25
    %p32 = scmp.eq.s32.totalorder %s16, 1
    %p33 = por %p31, %p32
    %p34 = scmp.ne.s32.totalorder %s26, %s29
    %p35 = scmp.eq.s32.totalorder %s16, 0
    %p36 = por %p34, %p35
    %p37 = scmp.ne.s32.totalorder %s26, %s29
    %p38 = scmp.eq.s32.totalorder %s21, 1
    %p39 = por %p37, %p38
    %p40 = scmp.ne.s32.totalorder %s29, %s30
    %p41 = scmp.eq.s32.totalorder %s21, 0
    %p42 = por %p40, %p41
    %p43 = scmp.ne.s32.totalorder %s29, %s30
    %p44 = scmp.eq.s32.totalorder %s22, 1
    %p45 = por %p43, %p44
    %p47 = scmp.ne.s32.totalorder %s30, %s46
    %p48 = scmp.eq.s32.totalorder %s22, 0
    %p49 = por %p47, %p48
    %s51 = sadd.s32 %s50, 1
    %p54 = scmp.eq.s32.totalorder %s16, 1
    %p55 = scmp.ne.s32.totalorder %s50, %s52
    %p56 = scmp.eq.s32.totalorder %s16, 0
    %p57 = por %p55, %p56
    %p58 = scmp.ne.s32.totalorder %s50, %s52
    %p59 = scmp.eq.s32.totalorder %s21, 1
    %p60 = por %p58, %p59
    %p61 = scmp.ne.s32.totalorder %s52, %s53
    %p62 = scmp.eq.s32.totalorder %s21, 0
    %p63 = por %p61, %p62
    %p64 = scmp.ne.s32.totalorder %s52, %s53
    %p65 = scmp.eq.s32.totalorder %s22, 1
    %p66 = por %p64, %p65
    %p68 = scmp.ne.s32.totalorder %s53, %s67
    %p69 = scmp.eq.s32.totalorder %s22, 0
    %p70 = por %p68, %p69
    %s72 = sadd.s32 %s71, 1
    %p75 = scmp.eq.s32.totalorder %s16, 1
    %p76 = scmp.ne.s32.totalorder %s71, %s73
    %p77 = scmp.eq.s32.totalorder %s16, 0
    %p78 = por %p76, %p77
    %p79 = scmp.ne.s32.totalorder %s71, %s73
    %p80 = scmp.eq.s32.totalorder %s21, 1
    %p81 = por %p79, %p80
    %p82 = scmp.ne.s32.totalorder %s73, %s74
    %p83 = scmp.eq.s32.totalorder %s21, 0
    %p84 = por %p82, %p83
    %p85 = scmp.ne.s32.totalorder %s73, %s74
    %p86 = scmp.eq.s32.totalorder %s22, 1
    %p87 = por %p85, %p86
    %p89 = scmp.ne.s32.totalorder %s74, %s88
    %p90 = scmp.eq.s32.totalorder %s22, 0
    %p91 = por %p89, %p90
    %s93 = sadd.s32 %s92, 1
    %p96 = scmp.eq.s32.totalorder %s16, 1
    %p97 = scmp.ne.s32.totalorder %s92, %s94
    %p98 = scmp.eq.s32.totalorder %s16, 0
    %p99 = por %p97, %p98
    %p100 = scmp.ne.s32.totalorder %s92, %s94
    %p101 = scmp.eq.s32.totalorder %s21, 1
    %p102 = por %p100, %p101
    %p103 = scmp.ne.s32.totalorder %s94, %s95
    %p104 = scmp.eq.s32.totalorder %s21, 0
    %p105 = por %p103, %p104
    %p106 = scmp.ne.s32.totalorder %s94, %s95
    %p107 = scmp.eq.s32.totalorder %s22, 1
    %p108 = por %p106, %p107
    %p110 = scmp.ne.s32.totalorder %s95, %s109
    %p111 = scmp.eq.s32.totalorder %s22, 0
    %p112 = por %p110, %p111
    %s114 = sadd.s32 %s113, 1
    %p117 = scmp.eq.s32.totalorder %s16, 1
    %p118 = scmp.ne.s32.totalorder %s113, %s115
    %p119 = scmp.eq.s32.totalorder %s16, 0
    %p120 = por %p118, %p119
    %p121 = scmp.ne.s32.totalorder %s113, %s115
    %p122 = scmp.eq.s32.totalorder %s21, 1
    %p123 = por %p121, %p122
    %p124 = scmp.ne.s32.totalorder %s115, %s116
    %p125 = scmp.eq.s32.totalorder %s21, 0
    %p126 = por %p124, %p125
    %p127 = scmp.ne.s32.totalorder %s115, %s116
    %p128 = scmp.eq.s32.totalorder %s22, 1
    %p129 = por %p127, %p128
    %p131 = scmp.ne.s32.totalorder %s116, %s130
    %p132 = scmp.eq.s32.totalorder %s22, 0
    %p133 = por %p131, %p132
    %s135 = sadd.s32 %s134, 1
    %p138 = scmp.eq.s32.totalorder %s16, 1
    %p139 = scmp.ne.s32.totalorder %s134, %s136
    %p140 = scmp.eq.s32.totalorder %s16, 0
    %p141 = por %p139, %p140
    %p142 = scmp.ne.s32.totalorder %s134, %s136
    %p143 = scmp.eq.s32.totalorder %s21, 1
    %p144 = por %p142, %p143
    %p145 = scmp.ne.s32.totalorder %s136, %s137
    %p146 = scmp.eq.s32.totalorder %s21, 0
    %p147 = por %p145, %p146
    %p148 = scmp.ne.s32.totalorder %s136, %s137
    %p149 = scmp.eq.s32.totalorder %s22, 1
    %p150 = por %p148, %p149
    %p152 = scmp.ne.s32.totalorder %s137, %s151
    %p153 = scmp.eq.s32.totalorder %s22, 0
    %p154 = por %p152, %p153
    %s156 = sadd.s32 %s155, 1
    %p159 = scmp.eq.s32.totalorder %s16, 1
    %p160 = scmp.ne.s32.totalorder %s155, %s157
    %p161 = scmp.eq.s32.totalorder %s16, 0
    %p162 = por %p160, %p161
    %p163 = scmp.ne.s32.totalorder %s155, %s157
    %p164 = scmp.eq.s32.totalorder %s21, 1
    %p165 = por %p163, %p164
    %p166 = scmp.ne.s32.totalorder %s157, %s158
    %p167 = scmp.eq.s32.totalorder %s21, 0
    %p168 = por %p166, %p167
    %p169 = scmp.ne.s32.totalorder %s157, %s158
    %p170 = scmp.eq.s32.totalorder %s22, 1
    %p171 = por %p169, %p170
    %p173 = scmp.ne.s32.totalorder %s158, %s172
    %p174 = scmp.eq.s32.totalorder %s22, 0
    %p175 = por %p173, %p174
    %s176 = ssub.s32 %s16, %s23
    %p177 = scmp.eq.s32.totalorder %s176, 0
    %s179 = sadd.s32 %s178, 1
    %s180 = scalar_select %p177, %s178, %s179
    %p183 = pneg %p177
    %p184 = scmp.eq.s32.totalorder %s16, 1
    %p185 = por %p183, %p184
    %p186 = scmp.ne.s32.totalorder %s178, %s181
    %p187 = scmp.eq.s32.totalorder %s16, 0
    %p188 = por %p186, %p187
    %p189 = scmp.ne.s32.totalorder %s178, %s181
    %p190 = scmp.eq.s32.totalorder %s21, 1
    %p191 = por %p189, %p190
    %p192 = scmp.ne.s32.totalorder %s181, %s182
    %p193 = scmp.eq.s32.totalorder %s21, 0
    %p194 = por %p192, %p193
    %p195 = scmp.ne.s32.totalorder %s181, %s182
    %p196 = scmp.eq.s32.totalorder %s22, 1
    %p197 = por %p195, %p196
    %p199 = scmp.ne.s32.totalorder %s182, %s198
    %p200 = scmp.eq.s32.totalorder %s22, 0
    %p201 = por %p199, %p200
    %s202 = ssub.s32 %s16, %s23
    %p203 = scmp.eq.s32.totalorder %s202, 0
    %s205 = sadd.s32 %s204, 1
    %s206 = scalar_select %p203, %s204, %s205
    %p209 = pneg %p203
    %p210 = scmp.eq.s32.totalorder %s16, 1
    %p211 = por %p209, %p210
    %p212 = scmp.ne.s32.totalorder %s204, %s207
    %p213 = scmp.eq.s32.totalorder %s16, 0
    %p214 = por %p212, %p213
    %p215 = scmp.ne.s32.totalorder %s204, %s207
    %p216 = scmp.eq.s32.totalorder %s21, 1
    %p217 = por %p215, %p216
    %p218 = scmp.ne.s32.totalorder %s207, %s208
    %p219 = scmp.eq.s32.totalorder %s21, 0
    %p220 = por %p218, %p219
    %p221 = scmp.ne.s32.totalorder %s207, %s208
    %p222 = scmp.eq.s32.totalorder %s22, 1
    %p223 = por %p221, %p222
    %p225 = scmp.ne.s32.totalorder %s208, %s224
    %p226 = scmp.eq.s32.totalorder %s22, 0
    %p227 = por %p225, %p226
    %s228 = ssub.s32 %s16, %s23
    %p229 = scmp.eq.s32.totalorder %s228, 0
    %s231 = sadd.s32 %s230, 1
    %s232 = scalar_select %p229, %s230, %s231
    %p235 = pneg %p229
    %p236 = scmp.eq.s32.totalorder %s16, 1
    %p237 = por %p235, %p236
    %p238 = scmp.ne.s32.totalorder %s230, %s233
    %p239 = scmp.eq.s32.totalorder %s16, 0
    %p240 = por %p238, %p239
    %p241 = scmp.ne.s32.totalorder %s230, %s233
    %p242 = scmp.eq.s32.totalorder %s21, 1
    %p243 = por %p241, %p242
    %p244 = scmp.ne.s32.totalorder %s233, %s234
    %p245 = scmp.eq.s32.totalorder %s21, 0
    %p246 = por %p244, %p245
    %p247 = scmp.ne.s32.totalorder %s233, %s234
    %p248 = scmp.eq.s32.totalorder %s22, 1
    %p249 = por %p247, %p248
    %p251 = scmp.ne.s32.totalorder %s234, %s250
    %p252 = scmp.eq.s32.totalorder %s22, 0
    %p253 = por %p251, %p252
    %p254 = scmp.le.s32.totalorder 1, %s16
    %p255 = scmp.lt.s32.totalorder %s16, 3
    %p256 = pnand %p254, %p255
    %p257 = pneg %p256
    // Predicated region
    $region9: #{variational_encoder_forward.1} parent=5 // pred_check
      _
    $region10: #{variational_encoder_forward.1} parent=5 // pred_check_branch
      %259 = sbr.rel (%p256) target = $region12
    $region11: #{variational_encoder_forward.1} parent=5 // pred_region
      %s260 = ssub.s32 %s16, 1
      // Predicated region
      $region13: #{variational_encoder_forward.1} parent=11 // pred_check
        %p261 = pneg %p63
      $region14: #{variational_encoder_forward.1} parent=11 // pred_check_branch
        %263 = sbr.rel (%p261) target = $region16
      $region15: #{variational_encoder_forward.1} parent=11 // pred_region
        _
      $region16: #{variational_encoder_forward.1} parent=11 // pred_fallthru
        _
      // Predicated region
      $region17: #{variational_encoder_forward.1} parent=11 // pred_check
        %p264 = pneg %p84
      $region18: #{variational_encoder_forward.1} parent=11 // pred_check_branch
        %266 = sbr.rel (%p264) target = $region20
      $region19: #{variational_encoder_forward.1} parent=11 // pred_region
        _
      $region20: #{variational_encoder_forward.1} parent=11 // pred_fallthru
        _
      // Predicated region
      $region21: #{variational_encoder_forward.1} parent=11 // pred_check
        %p267 = pneg %p105
      $region22: #{variational_encoder_forward.1} parent=11 // pred_check_branch
        %269 = sbr.rel (%p267) target = $region24
      $region23: #{variational_encoder_forward.1} parent=11 // pred_region
        _
      $region24: #{variational_encoder_forward.1} parent=11 // pred_fallthru
        _
      // Predicated region
      $region25: #{variational_encoder_forward.1} parent=11 // pred_check
        %p270 = pneg %p126
      $region26: #{variational_encoder_forward.1} parent=11 // pred_check_branch
        %272 = sbr.rel (%p270) target = $region28
      $region27: #{variational_encoder_forward.1} parent=11 // pred_region
        _
      $region28: #{variational_encoder_forward.1} parent=11 // pred_fallthru
        _
      // Predicated region
      $region29: #{variational_encoder_forward.1} parent=11 // pred_check
        %p273 = pneg %p147
      $region30: #{variational_encoder_forward.1} parent=11 // pred_check_branch
        %275 = sbr.rel (%p273) target = $region32
      $region31: #{variational_encoder_forward.1} parent=11 // pred_region
        _
      $region32: #{variational_encoder_forward.1} parent=11 // pred_fallthru
        _
      // Predicated region
      $region33: #{variational_encoder_forward.1} parent=11 // pred_check
        %p276 = pneg %p168
      $region34: #{variational_encoder_forward.1} parent=11 // pred_check_branch
        %278 = sbr.rel (%p276) target = $region36
      $region35: #{variational_encoder_forward.1} parent=11 // pred_region
        _
      $region36: #{variational_encoder_forward.1} parent=11 // pred_fallthru
        _
    $region12: #{variational_encoder_forward.1} parent=5 // pred_fallthru
      _
    %p279 = scmp.lt.s32.totalorder %s16, 2
    // Predicated region
    $region37: #{variational_encoder_forward.1} parent=5 // pred_check
      %p280 = pneg %p279
    $region38: #{variational_encoder_forward.1} parent=5 // pred_check_branch
      %282 = sbr.rel (%p280) target = $region40
    $region39: #{variational_encoder_forward.1} parent=5 // pred_region
      // Predicated region
      $region41: #{variational_encoder_forward.1} parent=39 // pred_check
        %p283 = pneg %p36
      $region42: #{variational_encoder_forward.1} parent=39 // pred_check_branch
        %285 = sbr.rel (%p283) target = $region44
      $region43: #{variational_encoder_forward.1} parent=39 // pred_region
        %s286 = smul.u32 16, %s16
        %p287 = scmp.lt.s32.totalorder %s286, 31
        %s288 = scalar_select %p287, %s286, 31
        %s289 = smul.addr %s288, 4
        %s290 = scalar_lea.vmem %s0, %s289
        %s291 = smul.u32 16, %s16
      $region44: #{variational_encoder_forward.1} parent=39 // pred_fallthru
        _
      // Predicated region
      $region45: #{variational_encoder_forward.1} parent=39 // pred_check
        %p292 = pneg %p188
      $region46: #{variational_encoder_forward.1} parent=39 // pred_check_branch
        %294 = sbr.rel (%p292) target = $region48
      $region47: #{variational_encoder_forward.1} parent=39 // pred_region
        %s295 = smul.u32 16, %s16
        %p296 = scmp.lt.s32.totalorder %s295, 31
        %s297 = scalar_select %p296, %s295, 31
        %s298 = smul.addr %s297, 8
        %s299 = scalar_lea.vmem %s7, %s298
        %s300 = smul.u32 16, %s16
      $region48: #{variational_encoder_forward.1} parent=39 // pred_fallthru
        _
    $region40: #{variational_encoder_forward.1} parent=5 // pred_fallthru
      _
    %p301 = scmp.le.s32.totalorder 1, %s16
    %p302 = scmp.lt.s32.totalorder %s16, 3
    %p303 = pnand %p301, %p302
    %p304 = pneg %p303
    // Predicated region
    $region49: #{variational_encoder_forward.1} parent=5 // pred_check
      _
    $region50: #{variational_encoder_forward.1} parent=5 // pred_check_branch
      %306 = sbr.rel (%p303) target = $region52
    $region51: #{variational_encoder_forward.1} parent=5 // pred_region
      %s307 = ssub.s32 %s16, 1
      %s308 = smul.u32 16, %s21
      %p309 = scmp.lt.s32.totalorder %s308, 31
      %s310 = scalar_select %p309, %s308, 31
      %s311 = smul.addr %s310, 4
      %s312 = scalar_lea.vmem %s0, %s311
      %p313 = pneg %p42
      %p314 = pneg %p39
      %p315 = pneg %p63
      %p316 = pneg %p60
      %p317 = pneg %p84
      %p318 = pneg %p81
      %p319 = pneg %p105
      %p320 = pneg %p102
      %p321 = pneg %p126
      %p322 = pneg %p123
      %p323 = pneg %p147
      %p324 = pneg %p144
      %p325 = pneg %p168
      %p326 = pneg %p165
      %s327 = smul.u32 16, %s21
      %p328 = scmp.lt.s32.totalorder %s327, 31
      %s329 = scalar_select %p328, %s327, 31
      %s330 = smul.addr %s329, 8
      %s331 = scalar_lea.vmem %s7, %s330
      %p332 = pneg %p194
      %p333 = pneg %p191
      %p334 = pneg %p220
      %p335 = pneg %p217
      %s336 = smul.u32 16, %s21
      %p337 = scmp.lt.s32.totalorder %s336, 31
      %s338 = scalar_select %p337, %s336, 31
      %s339 = smul.addr %s338, 8
      %s340 = scalar_lea.vmem %s8, %s339
      %p341 = pneg %p246
      %p342 = pneg %p243
      %s343 = smul.u32 16, %s21
      %p344 = scmp.lt.s32.totalorder %s343, 31
      %s345 = scalar_select %p344, %s343, 31
      %s346 = smul.addr %s345, 8
      %s347 = scalar_lea.vmem %s9, %s346
      %s348 = smul.u32 16, %s21
      %p349 = scmp.lt.s32.totalorder %s348, 31
      %s350 = scalar_select %p349, %s348, 31
      %s351 = smul.addr %s350, 4
      %s352 = scalar_lea.vmem %s0, %s351
      %s353 = smul.u32 16, %s21
      %s354 = smul.u32 16, %s21
      %p355 = scmp.lt.s32.totalorder %s354, 31
      %s356 = scalar_select %p355, %s354, 31
      %s357 = smul.addr %s356, 8
      %s358 = scalar_lea.vmem %s7, %s357
      %s359 = smul.u32 16, %s21
      %s360 = smul.u32 16, %s21
      %p361 = scmp.lt.s32.totalorder %s360, 31
      %s362 = scalar_select %p361, %s360, 31
      %s363 = smul.addr %s362, 8
      %s364 = scalar_lea.vmem %s8, %s363
      %s365 = smul.u32 16, %s21
      %s366 = smul.u32 16, %s21
      %p367 = scmp.lt.s32.totalorder %s366, 31
      %s368 = scalar_select %p367, %s366, 31
      %s369 = smul.addr %s368, 8
      %s370 = scalar_lea.vmem %s9, %s369
      %s371 = smul.u32 16, %s21
      %v373 = vld [vmem:[%s352] sm:$0xf]
      %v374 = vld [vmem:[%s352 + $0x4] sm:$0xf]
      %v375 = vld [vmem:[%s352 + $0x8] sm:$0xf]
      %v376 = vld [vmem:[%s352 + $0xc] sm:$0xf]
      %v377 = vld [vmem:[%s352 + $0x10] sm:$0xf]
      %v378 = vld [vmem:[%s352 + $0x14] sm:$0xf]
      %v379 = vld [vmem:[%s352 + $0x18] sm:$0xf]
      %v380 = vld [vmem:[%s352 + $0x1c] sm:$0xf]
      %v381 = vld [vmem:[%s352 + $0x20] sm:$0xf]
      %v382 = vld [vmem:[%s352 + $0x24] sm:$0xf]
      %v383 = vld [vmem:[%s352 + $0x28] sm:$0xf]
      %v384 = vld [vmem:[%s352 + $0x2c] sm:$0xf]
      %v385 = vld [vmem:[%s352 + $0x30] sm:$0xf]
      %v386 = vld [vmem:[%s352 + $0x34] sm:$0xf]
      %v387 = vld [vmem:[%s352 + $0x38] sm:$0xf]
      %v388 = vld [vmem:[%s352 + $0x3c] sm:$0xf]
      %v389 = vld [vmem:[%s1] sm:$0xf]
      %v390 = vld [vmem:[%s1 + $0x4] sm:$0xf]
      %v391 = vld [vmem:[%s1 + $0x8] sm:$0xf]
      %v392 = vld [vmem:[%s1 + $0xc] sm:$0xf]
      %v393 = vld [vmem:[%s1 + $0x10] sm:$0xf]
      %v394 = vld [vmem:[%s1 + $0x14] sm:$0xf]
      %v395 = vld [vmem:[%s1 + $0x18] sm:$0xf]
      %v396 = vld [vmem:[%s1 + $0x1c] sm:$0xf]
      %v397 = vld [vmem:[%s1 + $0x20] sm:$0xf]
      %v398 = vld [vmem:[%s1 + $0x24] sm:$0xf]
      %v399 = vld [vmem:[%s1 + $0x28] sm:$0xf]
      %v400 = vld [vmem:[%s1 + $0x2c] sm:$0xf]
      %v401 = vld [vmem:[%s1 + $0x30] sm:$0xf]
      %v402 = vld [vmem:[%s1 + $0x34] sm:$0xf]
      %v403 = vld [vmem:[%s1 + $0x38] sm:$0xf]
      %v404 = vld [vmem:[%s1 + $0x3c] sm:$0xf]
      %v405 = vld [vmem:[%s2] sm:$0x1]
      %v407 = vlaneseq
      %v408 = vshrl.u32 %v407, 7
      %v409 = vsub.s32 0, %v408
      %v410 = vrot.slane %v405, %v409
      %v428 = vunpack.c.l.b16 %v373
      %v429 = vunpack.c.l.b16 %v374
      %v430 = vunpack.c.l.b16 %v375
      %v431 = vunpack.c.l.b16 %v376
      %v432 = vunpack.c.l.b16 %v377
      %v433 = vunpack.c.l.b16 %v378
      %v434 = vunpack.c.l.b16 %v379
      %v435 = vunpack.c.l.b16 %v380
      %v436 = vunpack.c.l.b16 %v381
      %v437 = vunpack.c.l.b16 %v382
      %v438 = vunpack.c.l.b16 %v383
      %v439 = vunpack.c.l.b16 %v384
      %v440 = vunpack.c.l.b16 %v385
      %v441 = vunpack.c.l.b16 %v386
      %v442 = vunpack.c.l.b16 %v387
      %v443 = vunpack.c.l.b16 %v388
      %v444 = vpack.c.b16 %v429, %v428
      %v445 = vpack.c.b16 %v431, %v430
      %v446 = vpack.c.b16 %v433, %v432
      %v447 = vpack.c.b16 %v435, %v434
      %v448 = vpack.c.b16 %v437, %v436
      %v449 = vpack.c.b16 %v439, %v438
      %v450 = vpack.c.b16 %v441, %v440
      %v451 = vpack.c.b16 %v443, %v442
      %v476 = vunpack.c.l.b16 %v389
      %v477 = vunpack.c.l.b16 %v390
      %v478 = vunpack.c.l.b16 %v391
      %v479 = vunpack.c.l.b16 %v392
      %v480 = vunpack.c.l.b16 %v393
      %v481 = vunpack.c.l.b16 %v394
      %v482 = vunpack.c.l.b16 %v395
      %v483 = vunpack.c.l.b16 %v396
      %v484 = vunpack.c.l.b16 %v397
      %v485 = vunpack.c.l.b16 %v398
      %v486 = vunpack.c.l.b16 %v399
      %v487 = vunpack.c.l.b16 %v400
      %v488 = vunpack.c.l.b16 %v401
      %v489 = vunpack.c.l.b16 %v402
      %v490 = vunpack.c.l.b16 %v403
      %v491 = vunpack.c.l.b16 %v404
      %v492 = vpack.c.b16 %v477, %v476
      %v493 = vpack.c.b16 %v479, %v478
      %v494 = vpack.c.b16 %v481, %v480
      %v495 = vpack.c.b16 %v483, %v482
      %v496 = vpack.c.b16 %v485, %v484
      %v497 = vpack.c.b16 %v487, %v486
      %v498 = vpack.c.b16 %v489, %v488
      %v499 = vpack.c.b16 %v491, %v490
      %508 = vmatprep.subr.bf16.mxu0 0
      %509 = vmatpush1.bf16.msra.mxu0 %v492
      %510 = vmatprep.subr.bf16.mxu0 0
      %511 = vmatpush1.bf16.msra.mxu0 %v493
      %512 = vmatprep.subr.bf16.mxu0 0
      %513 = vmatpush1.bf16.msra.mxu0 %v494
      %514 = vmatprep.subr.bf16.mxu0 0
      %515 = vmatpush1.bf16.msra.mxu0 %v495
      %516 = vmatprep.subr.bf16.mxu0 0
      %517 = vmatpush1.bf16.msra.mxu0 %v496
      %518 = vmatprep.subr.bf16.mxu0 0
      %519 = vmatpush1.bf16.msra.mxu0 %v497
      %520 = vmatprep.subr.bf16.mxu0 0
      %521 = vmatpush1.bf16.msra.mxu0 %v498
      %522 = vmatprep.subr.bf16.mxu0 0
      %523 = vmatpush1.bf16.msra.mxu0 %v499
      %524 = vmatprep.subr.bf16.mxu0 0
      %525 = vmatpush1.bf16.msra.mxu0 0
      %526 = vmatprep.subr.bf16.mxu0 0
      %527 = vmatpush1.bf16.msra.mxu0 0
      %528 = vmatprep.subr.bf16.mxu0 0
      %529 = vmatpush1.bf16.msra.mxu0 0
      %530 = vmatprep.subr.bf16.mxu0 0
      %531 = vmatpush1.bf16.msra.mxu0 0
      %532 = vmatprep.subr.bf16.mxu0 0
      %533 = vmatpush1.bf16.msra.mxu0 0
      %534 = vmatprep.subr.bf16.mxu0 0
      %535 = vmatpush1.bf16.msra.mxu0 0
      %536 = vmatprep.subr.bf16.mxu0 0
      %537 = vmatpush1.bf16.msra.mxu0 0
      %538 = vmatprep.subr.bf16.mxu0 0
      %539 = vmatpush1.bf16.msra.mxu0 0
      %540 = vmatprep.mubr.bf16.mxu0 0
      %541 = vmatmul.mubr.bf16.gmra.mrb[0].mxu0 %v444
      %v542 = vpop.f32.mrb[0].mxu0
      %v543 = vadd.f32 %v410, %v542
      %v544 = vpop.f32.mrb[0].mxu0
      %v545 = vpop.f32.mrb[0].mxu0
      %v546 = vadd.f32 %v410, %v545
      %v547 = vpop.f32.mrb[0].mxu0
      %548 = vmatprep.mubr.bf16.mxu0 0
      %549 = vmatmul.mubr.bf16.gmra.mrb[0].mxu0 %v445
      %v550 = vpop.f32.mrb[0].mxu0
      %v551 = vadd.f32 %v410, %v550
      %v552 = vpop.f32.mrb[0].mxu0
      %v553 = vpop.f32.mrb[0].mxu0
      %v554 = vadd.f32 %v410, %v553
      %v555 = vpop.f32.mrb[0].mxu0
      %556 = vmatprep.mubr.bf16.mxu0 0
      %557 = vmatmul.mubr.bf16.gmra.mrb[0].mxu0 %v446
      %v558 = vpop.f32.mrb[0].mxu0
      %v559 = vadd.f32 %v410, %v558
      %v560 = vpop.f32.mrb[0].mxu0
      %v561 = vpop.f32.mrb[0].mxu0
      %v562 = vadd.f32 %v410, %v561
      %v563 = vpop.f32.mrb[0].mxu0
      %564 = vmatprep.mubr.bf16.mxu0 0
      %565 = vmatmul.mubr.bf16.gmra.mrb[0].mxu0 %v447
      %v566 = vpop.f32.mrb[0].mxu0
      %v567 = vadd.f32 %v410, %v566
      %v568 = vpop.f32.mrb[0].mxu0
      %v569 = vpop.f32.mrb[0].mxu0
      %v570 = vadd.f32 %v410, %v569
      %v571 = vpop.f32.mrb[0].mxu0
      %572 = vmatprep.mubr.bf16.mxu0 0
      %573 = vmatmul.mubr.bf16.gmra.mrb[0].mxu0 %v448
      %v574 = vpop.f32.mrb[0].mxu0
      %v575 = vadd.f32 %v410, %v574
      %v576 = vpop.f32.mrb[0].mxu0
      %v577 = vpop.f32.mrb[0].mxu0
      %v578 = vadd.f32 %v410, %v577
      %v579 = vpop.f32.mrb[0].mxu0
      %580 = vmatprep.mubr.bf16.mxu0 0
      %581 = vmatmul.mubr.bf16.gmra.mrb[0].mxu0 %v449
      %v582 = vpop.f32.mrb[0].mxu0
      %v583 = vadd.f32 %v410, %v582
      %v584 = vpop.f32.mrb[0].mxu0
      %v585 = vpop.f32.mrb[0].mxu0
      %v586 = vadd.f32 %v410, %v585
      %v587 = vpop.f32.mrb[0].mxu0
      %588 = vmatprep.mubr.bf16.mxu0 0
      %589 = vmatmul.mubr.bf16.gmra.mrb[0].mxu0 %v450
      %v590 = vpop.f32.mrb[0].mxu0
      %v591 = vadd.f32 %v410, %v590
      %v592 = vpop.f32.mrb[0].mxu0
      %v593 = vpop.f32.mrb[0].mxu0
      %v594 = vadd.f32 %v410, %v593
      %v595 = vpop.f32.mrb[0].mxu0
      %596 = vmatprep.mubr.bf16.mxu0 0
      %597 = vmatmul.mubr.bf16.gmra.mrb[0].mxu0 %v451
      %v598 = vpop.f32.mrb[0].mxu0
      %v599 = vadd.f32 %v410, %v598
      %v600 = vpop.f32.mrb[0].mxu0
      %v601 = vpop.f32.mrb[0].mxu0
      %v602 = vadd.f32 %v410, %v601
      %v603 = vpop.f32.mrb[0].mxu0
      %604 = vdwg.mxu0
      %v605 = vmul.f32 %v543, 0.5
      %v606 = vmul.f32 %v546, 0.5
      %v607 = vmul.f32 %v551, 0.5
      %v608 = vmul.f32 %v554, 0.5
      %v609 = vmul.f32 %v559, 0.5
      %v610 = vmul.f32 %v562, 0.5
      %v611 = vmul.f32 %v567, 0.5
      %v612 = vmul.f32 %v570, 0.5
      %v613 = vmul.f32 %v575, 0.5
      %v614 = vmul.f32 %v578, 0.5
      %v615 = vmul.f32 %v583, 0.5
      %v616 = vmul.f32 %v586, 0.5
      %v617 = vmul.f32 %v591, 0.5
      %v618 = vmul.f32 %v594, 0.5
      %v619 = vmul.f32 %v599, 0.5
      %v620 = vmul.f32 %v602, 0.5
      %v621 = vmul.f32 %v543, 0.044715
      %v622 = vmul.f32 %v546, 0.044715
      %v623 = vmul.f32 %v551, 0.044715
      %v624 = vmul.f32 %v554, 0.044715
      %v625 = vmul.f32 %v559, 0.044715
      %v626 = vmul.f32 %v562, 0.044715
      %v627 = vmul.f32 %v567, 0.044715
      %v628 = vmul.f32 %v570, 0.044715
      %v629 = vmul.f32 %v575, 0.044715
      %v630 = vmul.f32 %v578, 0.044715
      %v631 = vmul.f32 %v583, 0.044715
      %v632 = vmul.f32 %v586, 0.044715
      %v633 = vmul.f32 %v591, 0.044715
      %v634 = vmul.f32 %v594, 0.044715
      %v635 = vmul.f32 %v599, 0.044715
      %v636 = vmul.f32 %v602, 0.044715
      %v637 = vmul.f32 %v621, %v543
      %v638 = vmul.f32 %v622, %v546
      %v639 = vmul.f32 %v623, %v551
      %v640 = vmul.f32 %v624, %v554
      %v641 = vmul.f32 %v625, %v559
      %v642 = vmul.f32 %v626, %v562
      %v643 = vmul.f32 %v627, %v567
      %v644 = vmul.f32 %v628, %v570
      %v645 = vmul.f32 %v629, %v575
      %v646 = vmul.f32 %v630, %v578
      %v647 = vmul.f32 %v631, %v583
      %v648 = vmul.f32 %v632, %v586
      %v649 = vmul.f32 %v633, %v591
      %v650 = vmul.f32 %v634, %v594
      %v651 = vmul.f32 %v635, %v599
      %v652 = vmul.f32 %v636, %v602
      %v653 = vmul.f32 %v637, %v543
      %v654 = vmul.f32 %v638, %v546
      %v655 = vmul.f32 %v639, %v551
      %v656 = vmul.f32 %v640, %v554
      %v657 = vmul.f32 %v641, %v559
      %v658 = vmul.f32 %v642, %v562
      %v659 = vmul.f32 %v643, %v567
      %v660 = vmul.f32 %v644, %v570
      %v661 = vmul.f32 %v645, %v575
      %v662 = vmul.f32 %v646, %v578
      %v663 = vmul.f32 %v647, %v583
      %v664 = vmul.f32 %v648, %v586
      %v665 = vmul.f32 %v649, %v591
      %v666 = vmul.f32 %v650, %v594
      %v667 = vmul.f32 %v651, %v599
      %v668 = vmul.f32 %v652, %v602
      %v669 = vadd.f32 %v543, %v653
      %v670 = vadd.f32 %v546, %v654
      %v671 = vadd.f32 %v551, %v655
      %v672 = vadd.f32 %v554, %v656
      %v673 = vadd.f32 %v559, %v657
      %v674 = vadd.f32 %v562, %v658
      %v675 = vadd.f32 %v567, %v659
      %v676 = vadd.f32 %v570, %v660
      %v677 = vadd.f32 %v575, %v661
      %v678 = vadd.f32 %v578, %v662
      %v679 = vadd.f32 %v583, %v663
      %v680 = vadd.f32 %v586, %v664
      %v681 = vadd.f32 %v591, %v665
      %v682 = vadd.f32 %v594, %v666
      %v683 = vadd.f32 %v599, %v667
      %v684 = vadd.f32 %v602, %v668
      %v685 = vmul.f32 %v669, 0.7978846
      %v686 = vmul.f32 %v670, 0.7978846
      %v687 = vmul.f32 %v671, 0.7978846
      %v688 = vmul.f32 %v672, 0.7978846
      %v689 = vmul.f32 %v673, 0.7978846
      %v690 = vmul.f32 %v674, 0.7978846
      %v691 = vmul.f32 %v675, 0.7978846
      %v692 = vmul.f32 %v676, 0.7978846
      %v693 = vmul.f32 %v677, 0.7978846
      %v694 = vmul.f32 %v678, 0.7978846
      %v695 = vmul.f32 %v679, 0.7978846
      %v696 = vmul.f32 %v680, 0.7978846
      %v697 = vmul.f32 %v681, 0.7978846
      %v698 = vmul.f32 %v682, 0.7978846
      %v699 = vmul.f32 %v683, 0.7978846
      %v700 = vmul.f32 %v684, 0.7978846
      %v701 = vtanh.pop %v685
      %v702 = vtanh.pop %v686
      %v703 = vtanh.pop %v687
      %v704 = vtanh.pop %v688
      %v705 = vtanh.pop %v689
      %v706 = vtanh.pop %v690
      %v707 = vtanh.pop %v691
      %v708 = vtanh.pop %v692
      %v709 = vtanh.pop %v693
      %v710 = vtanh.pop %v694
      %v711 = vtanh.pop %v695
      %v712 = vtanh.pop %v696
      %v713 = vtanh.pop %v697
      %v714 = vtanh.pop %v698
      %v715 = vtanh.pop %v699
      %v716 = vtanh.pop %v700
      %v717 = vadd.f32 %v701, 1.0
      %v718 = vadd.f32 %v702, 1.0
      %v719 = vadd.f32 %v703, 1.0
      %v720 = vadd.f32 %v704, 1.0
      %v721 = vadd.f32 %v705, 1.0
      %v722 = vadd.f32 %v706, 1.0
      %v723 = vadd.f32 %v707, 1.0
      %v724 = vadd.f32 %v708, 1.0
      %v725 = vadd.f32 %v709, 1.0
      %v726 = vadd.f32 %v710, 1.0
      %v727 = vadd.f32 %v711, 1.0
      %v728 = vadd.f32 %v712, 1.0
      %v729 = vadd.f32 %v713, 1.0
      %v730 = vadd.f32 %v714, 1.0
      %v731 = vadd.f32 %v715, 1.0
      %v732 = vadd.f32 %v716, 1.0
      %v733 = vmul.f32 %v605, %v717
      %v734 = vmul.f32 %v606, %v718
      %v735 = vmul.f32 %v607, %v719
      %v736 = vmul.f32 %v608, %v720
      %v737 = vmul.f32 %v609, %v721
      %v738 = vmul.f32 %v610, %v722
      %v739 = vmul.f32 %v611, %v723
      %v740 = vmul.f32 %v612, %v724
      %v741 = vmul.f32 %v613, %v725
      %v742 = vmul.f32 %v614, %v726
      %v743 = vmul.f32 %v615, %v727
      %v744 = vmul.f32 %v616, %v728
      %v745 = vmul.f32 %v617, %v729
      %v746 = vmul.f32 %v618, %v730
      %v747 = vmul.f32 %v619, %v731
      %v748 = vmul.f32 %v620, %v732
      %v749 = vpack.c.bf16 %v734, %v733
      %v750 = vpack.c.bf16 %v736, %v735
      %v751 = vpack.c.bf16 %v738, %v737
      %v752 = vpack.c.bf16 %v740, %v739
      %v753 = vpack.c.bf16 %v742, %v741
      %v754 = vpack.c.bf16 %v744, %v743
      %v755 = vpack.c.bf16 %v746, %v745
      %v756 = vpack.c.bf16 %v748, %v747
      %v757 = vld [vmem:[%s3] sm:$0xf]
      %v758 = vld [vmem:[%s3 + $0x4] sm:$0xf]
      %v759 = vld [vmem:[%s3 + $0x8] sm:$0xf]
      %v760 = vld [vmem:[%s3 + $0xc] sm:$0xf]
      %v761 = vld [vmem:[%s3 + $0x10] sm:$0xf]
      %v762 = vld [vmem:[%s3 + $0x14] sm:$0xf]
      %v763 = vld [vmem:[%s3 + $0x18] sm:$0xf]
      %v764 = vld [vmem:[%s3 + $0x1c] sm:$0xf]
      %v765 = vld [vmem:[%s3 + $0x20] sm:$0xf]
      %v766 = vld [vmem:[%s3 + $0x24] sm:$0xf]
      %v767 = vld [vmem:[%s3 + $0x28] sm:$0xf]
      %v768 = vld [vmem:[%s3 + $0x2c] sm:$0xf]
      %v769 = vld [vmem:[%s3 + $0x30] sm:$0xf]
      %v770 = vld [vmem:[%s3 + $0x34] sm:$0xf]
      %v771 = vld [vmem:[%s3 + $0x38] sm:$0xf]
      %v772 = vld [vmem:[%s3 + $0x3c] sm:$0xf]
      %v773 = vld [vmem:[%s4] sm:$0x1]
      %v775 = vlaneseq
      %v776 = vshrl.u32 %v775, 7
      %v777 = vsub.s32 0, %v776
      %v778 = vrot.slane %v773, %v777
      %v796 = vunpack.c.l.b16 %v757
      %v797 = vunpack.c.l.b16 %v758
      %v798 = vunpack.c.l.b16 %v759
      %v799 = vunpack.c.l.b16 %v760
      %v800 = vunpack.c.l.b16 %v761
      %v801 = vunpack.c.l.b16 %v762
      %v802 = vunpack.c.l.b16 %v763
      %v803 = vunpack.c.l.b16 %v764
      %v804 = vunpack.c.l.b16 %v765
      %v805 = vunpack.c.l.b16 %v766
      %v806 = vunpack.c.l.b16 %v767
      %v807 = vunpack.c.l.b16 %v768
      %v808 = vunpack.c.l.b16 %v769
      %v809 = vunpack.c.l.b16 %v770
      %v810 = vunpack.c.l.b16 %v771
      %v811 = vunpack.c.l.b16 %v772
      %v812 = vpack.c.b16 %v797, %v796
      %v813 = vpack.c.b16 %v799, %v798
      %v814 = vpack.c.b16 %v801, %v800
      %v815 = vpack.c.b16 %v803, %v802
      %v816 = vpack.c.b16 %v805, %v804
      %v817 = vpack.c.b16 %v807, %v806
      %v818 = vpack.c.b16 %v809, %v808
      %v819 = vpack.c.b16 %v811, %v810
      %828 = vmatprep.subr.bf16.mxu0 0
      %829 = vmatpush1.bf16.msra.mxu0 %v812
      %830 = vmatprep.subr.bf16.mxu0 0
      %831 = vmatpush1.bf16.msra.mxu0 %v813
      %832 = vmatprep.subr.bf16.mxu0 0
      %833 = vmatpush1.bf16.msra.mxu0 %v814
      %834 = vmatprep.subr.bf16.mxu0 0
      %835 = vmatpush1.bf16.msra.mxu0 %v815
      %836 = vmatprep.subr.bf16.mxu0 0
      %837 = vmatpush1.bf16.msra.mxu0 %v816
      %838 = vmatprep.subr.bf16.mxu0 0
      %839 = vmatpush1.bf16.msra.mxu0 %v817
      %840 = vmatprep.subr.bf16.mxu0 0
      %841 = vmatpush1.bf16.msra.mxu0 %v818
      %842 = vmatprep.subr.bf16.mxu0 0
      %843 = vmatpush1.bf16.msra.mxu0 %v819
      %844 = vmatprep.subr.bf16.mxu0 0
      %845 = vmatpush1.bf16.msra.mxu0 0
      %846 = vmatprep.subr.bf16.mxu0 0
      %847 = vmatpush1.bf16.msra.mxu0 0
      %848 = vmatprep.subr.bf16.mxu0 0
      %849 = vmatpush1.bf16.msra.mxu0 0
      %850 = vmatprep.subr.bf16.mxu0 0
      %851 = vmatpush1.bf16.msra.mxu0 0
      %852 = vmatprep.subr.bf16.mxu0 0
      %853 = vmatpush1.bf16.msra.mxu0 0
      %854 = vmatprep.subr.bf16.mxu0 0
      %855 = vmatpush1.bf16.msra.mxu0 0
      %856 = vmatprep.subr.bf16.mxu0 0
      %857 = vmatpush1.bf16.msra.mxu0 0
      %858 = vmatprep.subr.bf16.mxu0 0
      %859 = vmatpush1.bf16.msra.mxu0 0
      %860 = vmatprep.mubr.bf16.mxu0 0
      %861 = vmatmul.mubr.bf16.gmra.mrb[0].mxu0 %v749
      %v862 = vpop.f32.mrb[0].mxu0
      %v863 = vadd.f32 %v778, %v862
      %v864 = vpop.f32.mrb[0].mxu0
      %v865 = vpop.f32.mrb[0].mxu0
      %v866 = vadd.f32 %v778, %v865
      %v867 = vpop.f32.mrb[0].mxu0
      %868 = vmatprep.mubr.bf16.mxu0 0
      %869 = vmatmul.mubr.bf16.gmra.mrb[0].mxu0 %v750
      %v870 = vpop.f32.mrb[0].mxu0
      %v871 = vadd.f32 %v778, %v870
      %v872 = vpop.f32.mrb[0].mxu0
      %v873 = vpop.f32.mrb[0].mxu0
      %v874 = vadd.f32 %v778, %v873
      %v875 = vpop.f32.mrb[0].mxu0
      %876 = vmatprep.mubr.bf16.mxu0 0
      %877 = vmatmul.mubr.bf16.gmra.mrb[0].mxu0 %v751
      %v878 = vpop.f32.mrb[0].mxu0
      %v879 = vadd.f32 %v778, %v878
      %v880 = vpop.f32.mrb[0].mxu0
      %v881 = vpop.f32.mrb[0].mxu0
      %v882 = vadd.f32 %v778, %v881
      %v883 = vpop.f32.mrb[0].mxu0
      %884 = vmatprep.mubr.bf16.mxu0 0
      %885 = vmatmul.mubr.bf16.gmra.mrb[0].mxu0 %v752
      %v886 = vpop.f32.mrb[0].mxu0
      %v887 = vadd.f32 %v778, %v886
      %v888 = vpop.f32.mrb[0].mxu0
      %v889 = vpop.f32.mrb[0].mxu0
      %v890 = vadd.f32 %v778, %v889
      %v891 = vpop.f32.mrb[0].mxu0
      %892 = vmatprep.mubr.bf16.mxu0 0
      %893 = vmatmul.mubr.bf16.gmra.mrb[0].mxu0 %v753
      %v894 = vpop.f32.mrb[0].mxu0
      %v895 = vadd.f32 %v778, %v894
      %v896 = vpop.f32.mrb[0].mxu0
      %v897 = vpop.f32.mrb[0].mxu0
      %v898 = vadd.f32 %v778, %v897
      %v899 = vpop.f32.mrb[0].mxu0
      %900 = vmatprep.mubr.bf16.mxu0 0
      %901 = vmatmul.mubr.bf16.gmra.mrb[0].mxu0 %v754
      %v902 = vpop.f32.mrb[0].mxu0
      %v903 = vadd.f32 %v778, %v902
      %v904 = vpop.f32.mrb[0].mxu0
      %v905 = vpop.f32.mrb[0].mxu0
      %v906 = vadd.f32 %v778, %v905
      %v907 = vpop.f32.mrb[0].mxu0
      %908 = vmatprep.mubr.bf16.mxu0 0
      %909 = vmatmul.mubr.bf16.gmra.mrb[0].mxu0 %v755
      %v910 = vpop.f32.mrb[0].mxu0
      %v911 = vadd.f32 %v778, %v910
      %v912 = vpop.f32.mrb[0].mxu0
      %v913 = vpop.f32.mrb[0].mxu0
      %v914 = vadd.f32 %v778, %v913
      %v915 = vpop.f32.mrb[0].mxu0
      %916 = vmatprep.mubr.bf16.mxu0 0
      %917 = vmatmul.mubr.bf16.gmra.mrb[0].mxu0 %v756
      %v918 = vpop.f32.mrb[0].mxu0
      %v919 = vadd.f32 %v778, %v918
      %v920 = vpop.f32.mrb[0].mxu0
      %v921 = vpop.f32.mrb[0].mxu0
      %v922 = vadd.f32 %v778, %v921
      %v923 = vpop.f32.mrb[0].mxu0
      %924 = vdwg.mxu0
      %v925 = vmul.f32 %v863, 0.5
      %v926 = vmul.f32 %v866, 0.5
      %v927 = vmul.f32 %v871, 0.5
      %v928 = vmul.f32 %v874, 0.5
      %v929 = vmul.f32 %v879, 0.5
      %v930 = vmul.f32 %v882, 0.5
      %v931 = vmul.f32 %v887, 0.5
      %v932 = vmul.f32 %v890, 0.5
      %v933 = vmul.f32 %v895, 0.5
      %v934 = vmul.f32 %v898, 0.5
      %v935 = vmul.f32 %v903, 0.5
      %v936 = vmul.f32 %v906, 0.5
      %v937 = vmul.f32 %v911, 0.5
      %v938 = vmul.f32 %v914, 0.5
      %v939 = vmul.f32 %v919, 0.5
      %v940 = vmul.f32 %v922, 0.5
      %v941 = vmul.f32 %v863, 0.044715
      %v942 = vmul.f32 %v866, 0.044715
      %v943 = vmul.f32 %v871, 0.044715
      %v944 = vmul.f32 %v874, 0.044715
      %v945 = vmul.f32 %v879, 0.044715
      %v946 = vmul.f32 %v882, 0.044715
      %v947 = vmul.f32 %v887, 0.044715
      %v948 = vmul.f32 %v890, 0.044715
      %v949 = vmul.f32 %v895, 0.044715
      %v950 = vmul.f32 %v898, 0.044715
      %v951 = vmul.f32 %v903, 0.044715
      %v952 = vmul.f32 %v906, 0.044715
      %v953 = vmul.f32 %v911, 0.044715
      %v954 = vmul.f32 %v914, 0.044715
      %v955 = vmul.f32 %v919, 0.044715
      %v956 = vmul.f32 %v922, 0.044715
      %v957 = vmul.f32 %v941, %v863
      %v958 = vmul.f32 %v942, %v866
      %v959 = vmul.f32 %v943, %v871
      %v960 = vmul.f32 %v944, %v874
      %v961 = vmul.f32 %v945, %v879
      %v962 = vmul.f32 %v946, %v882
      %v963 = vmul.f32 %v947, %v887
      %v964 = vmul.f32 %v948, %v890
      %v965 = vmul.f32 %v949, %v895
      %v966 = vmul.f32 %v950, %v898
      %v967 = vmul.f32 %v951, %v903
      %v968 = vmul.f32 %v952, %v906
      %v969 = vmul.f32 %v953, %v911
      %v970 = vmul.f32 %v954, %v914
      %v971 = vmul.f32 %v955, %v919
      %v972 = vmul.f32 %v956, %v922
      %v973 = vmul.f32 %v957, %v863
      %v974 = vmul.f32 %v958, %v866
      %v975 = vmul.f32 %v959, %v871
      %v976 = vmul.f32 %v960, %v874
      %v977 = vmul.f32 %v961, %v879
      %v978 = vmul.f32 %v962, %v882
      %v979 = vmul.f32 %v963, %v887
      %v980 = vmul.f32 %v964, %v890
      %v981 = vmul.f32 %v965, %v895
      %v982 = vmul.f32 %v966, %v898
      %v983 = vmul.f32 %v967, %v903
      %v984 = vmul.f32 %v968, %v906
      %v985 = vmul.f32 %v969, %v911
      %v986 = vmul.f32 %v970, %v914
      %v987 = vmul.f32 %v971, %v919
      %v988 = vmul.f32 %v972, %v922
      %v989 = vadd.f32 %v863, %v973
      %v990 = vadd.f32 %v866, %v974
      %v991 = vadd.f32 %v871, %v975
      %v992 = vadd.f32 %v874, %v976
      %v993 = vadd.f32 %v879, %v977
      %v994 = vadd.f32 %v882, %v978
      %v995 = vadd.f32 %v887, %v979
      %v996 = vadd.f32 %v890, %v980
      %v997 = vadd.f32 %v895, %v981
      %v998 = vadd.f32 %v898, %v982
      %v999 = vadd.f32 %v903, %v983
      %v1000 = vadd.f32 %v906, %v984
      %v1001 = vadd.f32 %v911, %v985
      %v1002 = vadd.f32 %v914, %v986
      %v1003 = vadd.f32 %v919, %v987
      %v1004 = vadd.f32 %v922, %v988
      %v1005 = vmul.f32 %v989, 0.7978846
      %v1006 = vmul.f32 %v990, 0.7978846
      %v1007 = vmul.f32 %v991, 0.7978846
      %v1008 = vmul.f32 %v992, 0.7978846
      %v1009 = vmul.f32 %v993, 0.7978846
      %v1010 = vmul.f32 %v994, 0.7978846
      %v1011 = vmul.f32 %v995, 0.7978846
      %v1012 = vmul.f32 %v996, 0.7978846
      %v1013 = vmul.f32 %v997, 0.7978846
      %v1014 = vmul.f32 %v998, 0.7978846
      %v1015 = vmul.f32 %v999, 0.7978846
      %v1016 = vmul.f32 %v1000, 0.7978846
      %v1017 = vmul.f32 %v1001, 0.7978846
      %v1018 = vmul.f32 %v1002, 0.7978846
      %v1019 = vmul.f32 %v1003, 0.7978846
      %v1020 = vmul.f32 %v1004, 0.7978846
      %v1021 = vtanh.pop %v1005
      %v1022 = vtanh.pop %v1006
      %v1023 = vtanh.pop %v1007
      %v1024 = vtanh.pop %v1008
      %v1025 = vtanh.pop %v1009
      %v1026 = vtanh.pop %v1010
      %v1027 = vtanh.pop %v1011
      %v1028 = vtanh.pop %v1012
      %v1029 = vtanh.pop %v1013
      %v1030 = vtanh.pop %v1014
      %v1031 = vtanh.pop %v1015
      %v1032 = vtanh.pop %v1016
      %v1033 = vtanh.pop %v1017
      %v1034 = vtanh.pop %v1018
      %v1035 = vtanh.pop %v1019
      %v1036 = vtanh.pop %v1020
      %v1037 = vadd.f32 %v1021, 1.0
      %v1038 = vadd.f32 %v1022, 1.0
      %v1039 = vadd.f32 %v1023, 1.0
      %v1040 = vadd.f32 %v1024, 1.0
      %v1041 = vadd.f32 %v1025, 1.0
      %v1042 = vadd.f32 %v1026, 1.0
      %v1043 = vadd.f32 %v1027, 1.0
      %v1044 = vadd.f32 %v1028, 1.0
      %v1045 = vadd.f32 %v1029, 1.0
      %v1046 = vadd.f32 %v1030, 1.0
      %v1047 = vadd.f32 %v1031, 1.0
      %v1048 = vadd.f32 %v1032, 1.0
      %v1049 = vadd.f32 %v1033, 1.0
      %v1050 = vadd.f32 %v1034, 1.0
      %v1051 = vadd.f32 %v1035, 1.0
      %v1052 = vadd.f32 %v1036, 1.0
      %v1053 = vmul.f32 %v925, %v1037
      %v1054 = vmul.f32 %v926, %v1038
      %v1055 = vmul.f32 %v927, %v1039
      %v1056 = vmul.f32 %v928, %v1040
      %v1057 = vmul.f32 %v929, %v1041
      %v1058 = vmul.f32 %v930, %v1042
      %v1059 = vmul.f32 %v931, %v1043
      %v1060 = vmul.f32 %v932, %v1044
      %v1061 = vmul.f32 %v933, %v1045
      %v1062 = vmul.f32 %v934, %v1046
      %v1063 = vmul.f32 %v935, %v1047
      %v1064 = vmul.f32 %v936, %v1048
      %v1065 = vmul.f32 %v937, %v1049
      %v1066 = vmul.f32 %v938, %v1050
      %v1067 = vmul.f32 %v939, %v1051
      %v1068 = vmul.f32 %v940, %v1052
      %v1069 = vpack.c.bf16 %v1054, %v1053
      %v1070 = vpack.c.bf16 %v1056, %v1055
      %v1071 = vpack.c.bf16 %v1058, %v1057
      %v1072 = vpack.c.bf16 %v1060, %v1059
      %v1073 = vpack.c.bf16 %v1062, %v1061
      %v1074 = vpack.c.bf16 %v1064, %v1063
      %v1075 = vpack.c.bf16 %v1066, %v1065
      %v1076 = vpack.c.bf16 %v1068, %v1067
      %v1077 = vld [vmem:[%s5] sm:$0xff]
      %v1078 = vld [vmem:[%s5 + $0x8] sm:$0xff]
      %v1079 = vld [vmem:[%s5 + $0x10] sm:$0xff]
      %v1080 = vld [vmem:[%s5 + $0x18] sm:$0xff]
      %v1081 = vld [vmem:[%s5 + $0x20] sm:$0xff]
      %v1082 = vld [vmem:[%s5 + $0x28] sm:$0xff]
      %v1083 = vld [vmem:[%s5 + $0x30] sm:$0xff]
      %v1084 = vld [vmem:[%s5 + $0x38] sm:$0xff]
      %v1085 = vld [vmem:[%s5 + $0x40] sm:$0xff]
      %v1086 = vld [vmem:[%s5 + $0x48] sm:$0xff]
      %v1087 = vld [vmem:[%s5 + $0x50] sm:$0xff]
      %v1088 = vld [vmem:[%s5 + $0x58] sm:$0xff]
      %v1089 = vld [vmem:[%s5 + $0x60] sm:$0xff]
      %v1090 = vld [vmem:[%s5 + $0x68] sm:$0xff]
      %v1091 = vld [vmem:[%s5 + $0x70] sm:$0xff]
      %v1092 = vld [vmem:[%s5 + $0x78] sm:$0xff]
      %v1093 = vld [vmem:[%s6] sm:$0x3]
      %v1095 = vlaneseq
      %v1096 = vshrl.u32 %v1095, 7
      %v1097 = vsub.s32 0, %v1096
      %v1098 = vrot.slane %v1093, %v1097
      %v1099 = vlaneseq
      %v1100 = vshrl.u32 %v1099, 7
      %v1101 = vsub.s32 1, %v1100
      %v1102 = vrot.slane %v1093, %v1101
      %v1121 = vunpack.c.l.b16 %v1077
      %v1122 = vunpack.c.h.b16 %v1077
      %v1123 = vunpack.c.l.b16 %v1078
      %v1124 = vunpack.c.h.b16 %v1078
      %v1125 = vunpack.c.l.b16 %v1079
      %v1126 = vunpack.c.h.b16 %v1079
      %v1127 = vunpack.c.l.b16 %v1080
      %v1128 = vunpack.c.h.b16 %v1080
      %v1129 = vunpack.c.l.b16 %v1081
      %v1130 = vunpack.c.h.b16 %v1081
      %v1131 = vunpack.c.l.b16 %v1082
      %v1132 = vunpack.c.h.b16 %v1082
      %v1133 = vunpack.c.l.b16 %v1083
      %v1134 = vunpack.c.h.b16 %v1083
      %v1135 = vunpack.c.l.b16 %v1084
      %v1136 = vunpack.c.h.b16 %v1084
      %v1137 = vunpack.c.l.b16 %v1085
      %v1138 = vunpack.c.h.b16 %v1085
      %v1139 = vunpack.c.l.b16 %v1086
      %v1140 = vunpack.c.h.b16 %v1086
      %v1141 = vunpack.c.l.b16 %v1087
      %v1142 = vunpack.c.h.b16 %v1087
      %v1143 = vunpack.c.l.b16 %v1088
      %v1144 = vunpack.c.h.b16 %v1088
      %v1145 = vunpack.c.l.b16 %v1089
      %v1146 = vunpack.c.h.b16 %v1089
      %v1147 = vunpack.c.l.b16 %v1090
      %v1148 = vunpack.c.h.b16 %v1090
      %v1149 = vunpack.c.l.b16 %v1091
      %v1150 = vunpack.c.h.b16 %v1091
      %v1151 = vunpack.c.l.b16 %v1092
      %v1152 = vunpack.c.h.b16 %v1092
      %v1153 = vpack.c.b16 %v1123, %v1121
      %v1154 = vpack.c.b16 %v1124, %v1122
      %v1155 = vpack.c.b16 %v1127, %v1125
      %v1156 = vpack.c.b16 %v1128, %v1126
      %v1157 = vpack.c.b16 %v1131, %v1129
      %v1158 = vpack.c.b16 %v1132, %v1130
      %v1159 = vpack.c.b16 %v1135, %v1133
      %v1160 = vpack.c.b16 %v1136, %v1134
      %v1161 = vpack.c.b16 %v1139, %v1137
      %v1162 = vpack.c.b16 %v1140, %v1138
      %v1163 = vpack.c.b16 %v1143, %v1141
      %v1164 = vpack.c.b16 %v1144, %v1142
      %v1165 = vpack.c.b16 %v1147, %v1145
      %v1166 = vpack.c.b16 %v1148, %v1146
      %v1167 = vpack.c.b16 %v1151, %v1149
      %v1168 = vpack.c.b16 %v1152, %v1150
      %1185 = vmatprep.subr.bf16.mxu0 %v1154
      %1186 = vmatpush1.bf16.msra.mxu0 %v1153
      %1187 = vmatprep.subr.bf16.mxu0 %v1156
      %1188 = vmatpush1.bf16.msra.mxu0 %v1155
      %1189 = vmatprep.subr.bf16.mxu0 %v1158
      %1190 = vmatpush1.bf16.msra.mxu0 %v1157
      %1191 = vmatprep.subr.bf16.mxu0 %v1160
      %1192 = vmatpush1.bf16.msra.mxu0 %v1159
      %1193 = vmatprep.subr.bf16.mxu0 %v1162
      %1194 = vmatpush1.bf16.msra.mxu0 %v1161
      %1195 = vmatprep.subr.bf16.mxu0 %v1164
      %1196 = vmatpush1.bf16.msra.mxu0 %v1163
      %1197 = vmatprep.subr.bf16.mxu0 %v1166
      %1198 = vmatpush1.bf16.msra.mxu0 %v1165
      %1199 = vmatprep.subr.bf16.mxu0 %v1168
      %1200 = vmatpush1.bf16.msra.mxu0 %v1167
      %1201 = vmatprep.subr.bf16.mxu0 0
      %1202 = vmatpush1.bf16.msra.mxu0 0
      %1203 = vmatprep.subr.bf16.mxu0 0
      %1204 = vmatpush1.bf16.msra.mxu0 0
      %1205 = vmatprep.subr.bf16.mxu0 0
      %1206 = vmatpush1.bf16.msra.mxu0 0
      %1207 = vmatprep.subr.bf16.mxu0 0
      %1208 = vmatpush1.bf16.msra.mxu0 0
      %1209 = vmatprep.subr.bf16.mxu0 0
      %1210 = vmatpush1.bf16.msra.mxu0 0
      %1211 = vmatprep.subr.bf16.mxu0 0
      %1212 = vmatpush1.bf16.msra.mxu0 0
      %1213 = vmatprep.subr.bf16.mxu0 0
      %1214 = vmatpush1.bf16.msra.mxu0 0
      %1215 = vmatprep.subr.bf16.mxu0 0
      %1216 = vmatpush1.bf16.msra.mxu0 0
      %1217 = vmatprep.mubr.bf16.mxu0 0
      %1218 = vmatmul.mubr.bf16.gmra.mrb[0].mxu0 %v1069
      %v1219 = vpop.f32.mrb[0].mxu0
      %v1220 = vadd.f32 %v1098, %v1219
      %v1221 = vpop.f32.mrb[0].mxu0
      %v1222 = vadd.f32 %v1102, %v1221
      %v1223 = vpop.f32.mrb[0].mxu0
      %v1224 = vadd.f32 %v1098, %v1223
      %v1225 = vpop.f32.mrb[0].mxu0
      %v1226 = vadd.f32 %v1102, %v1225
      %1227 = vmatprep.mubr.bf16.mxu0 0
      %1228 = vmatmul.mubr.bf16.gmra.mrb[0].mxu0 %v1070
      %v1229 = vpop.f32.mrb[0].mxu0
      %v1230 = vadd.f32 %v1098, %v1229
      %v1231 = vpop.f32.mrb[0].mxu0
      %v1232 = vadd.f32 %v1102, %v1231
      %v1233 = vpop.f32.mrb[0].mxu0
      %v1234 = vadd.f32 %v1098, %v1233
      %v1235 = vpop.f32.mrb[0].mxu0
      %v1236 = vadd.f32 %v1102, %v1235
      %1237 = vmatprep.mubr.bf16.mxu0 0
      %1238 = vmatmul.mubr.bf16.gmra.mrb[0].mxu0 %v1071
      %v1239 = vpop.f32.mrb[0].mxu0
      %v1240 = vadd.f32 %v1098, %v1239
      %v1241 = vpop.f32.mrb[0].mxu0
      %v1242 = vadd.f32 %v1102, %v1241
      %v1243 = vpop.f32.mrb[0].mxu0
      %v1244 = vadd.f32 %v1098, %v1243
      %v1245 = vpop.f32.mrb[0].mxu0
      %v1246 = vadd.f32 %v1102, %v1245
      %1247 = vmatprep.mubr.bf16.mxu0 0
      %1248 = vmatmul.mubr.bf16.gmra.mrb[0].mxu0 %v1072
      %v1249 = vpop.f32.mrb[0].mxu0
      %v1250 = vadd.f32 %v1098, %v1249
      %v1251 = vpop.f32.mrb[0].mxu0
      %v1252 = vadd.f32 %v1102, %v1251
      %v1253 = vpop.f32.mrb[0].mxu0
      %v1254 = vadd.f32 %v1098, %v1253
      %v1255 = vpop.f32.mrb[0].mxu0
      %v1256 = vadd.f32 %v1102, %v1255
      %1257 = vmatprep.mubr.bf16.mxu0 0
      %1258 = vmatmul.mubr.bf16.gmra.mrb[0].mxu0 %v1073
      %v1259 = vpop.f32.mrb[0].mxu0
      %v1260 = vadd.f32 %v1098, %v1259
      %v1261 = vpop.f32.mrb[0].mxu0
      %v1262 = vadd.f32 %v1102, %v1261
      %v1263 = vpop.f32.mrb[0].mxu0
      %v1264 = vadd.f32 %v1098, %v1263
      %v1265 = vpop.f32.mrb[0].mxu0
      %v1266 = vadd.f32 %v1102, %v1265
      %1267 = vmatprep.mubr.bf16.mxu0 0
      %1268 = vmatmul.mubr.bf16.gmra.mrb[0].mxu0 %v1074
      %v1269 = vpop.f32.mrb[0].mxu0
      %v1270 = vadd.f32 %v1098, %v1269
      %v1271 = vpop.f32.mrb[0].mxu0
      %v1272 = vadd.f32 %v1102, %v1271
      %v1273 = vpop.f32.mrb[0].mxu0
      %v1274 = vadd.f32 %v1098, %v1273
      %v1275 = vpop.f32.mrb[0].mxu0
      %v1276 = vadd.f32 %v1102, %v1275
      %1277 = vmatprep.mubr.bf16.mxu0 0
      %1278 = vmatmul.mubr.bf16.gmra.mrb[0].mxu0 %v1075
      %v1279 = vpop.f32.mrb[0].mxu0
      %v1280 = vadd.f32 %v1098, %v1279
      %v1281 = vpop.f32.mrb[0].mxu0
      %v1282 = vadd.f32 %v1102, %v1281
      %v1283 = vpop.f32.mrb[0].mxu0
      %v1284 = vadd.f32 %v1098, %v1283
      %v1285 = vpop.f32.mrb[0].mxu0
      %v1286 = vadd.f32 %v1102, %v1285
      %1287 = vmatprep.mubr.bf16.mxu0 0
      %1288 = vmatmul.mubr.bf16.gmra.mrb[0].mxu0 %v1076
      %v1289 = vpop.f32.mrb[0].mxu0
      %v1290 = vadd.f32 %v1098, %v1289
      %v1291 = vpop.f32.mrb[0].mxu0
      %v1292 = vadd.f32 %v1102, %v1291
      %v1293 = vpop.f32.mrb[0].mxu0
      %v1294 = vadd.f32 %v1098, %v1293
      %v1295 = vpop.f32.mrb[0].mxu0
      %v1296 = vadd.f32 %v1102, %v1295
      %1297 = vdwg.mxu0
      %v1298 = vmul.f32 %v1222, 1.442695
      %v1299 = vpow.pop %v1298
      %v1300 = vmul.f32 %v1226, 1.442695
      %v1301 = vpow.pop %v1300
      %v1302 = vmul.f32 %v1232, 1.442695
      %v1303 = vpow.pop %v1302
      %v1304 = vmul.f32 %v1236, 1.442695
      %v1305 = vpow.pop %v1304
      %v1306 = vmul.f32 %v1242, 1.442695
      %v1307 = vpow.pop %v1306
      %v1308 = vmul.f32 %v1246, 1.442695
      %v1309 = vpow.pop %v1308
      %v1310 = vmul.f32 %v1252, 1.442695
      %v1311 = vpow.pop %v1310
      %v1312 = vmul.f32 %v1256, 1.442695
      %v1313 = vpow.pop %v1312
      %v1314 = vmul.f32 %v1262, 1.442695
      %v1315 = vpow.pop %v1314
      %v1316 = vmul.f32 %v1266, 1.442695
      %v1317 = vpow.pop %v1316
      %v1318 = vmul.f32 %v1272, 1.442695
      %v1319 = vpow.pop %v1318
      %v1320 = vmul.f32 %v1276, 1.442695
      %v1321 = vpow.pop %v1320
      %v1322 = vmul.f32 %v1282, 1.442695
      %v1323 = vpow.pop %v1322
      %v1324 = vmul.f32 %v1286, 1.442695
      %v1325 = vpow.pop %v1324
      %v1326 = vmul.f32 %v1292, 1.442695
      %v1327 = vpow.pop %v1326
      %v1328 = vmul.f32 %v1296, 1.442695
      %v1329 = vpow.pop %v1328
      %v1330 = vld [vmem:[%s358] sm:$0xff]
      %v1331 = vld [vmem:[%s358 + $0x8] sm:$0xff]
      %v1332 = vld [vmem:[%s358 + $0x10] sm:$0xff]
      %v1333 = vld [vmem:[%s358 + $0x18] sm:$0xff]
      %v1334 = vld [vmem:[%s358 + $0x20] sm:$0xff]
      %v1335 = vld [vmem:[%s358 + $0x28] sm:$0xff]
      %v1336 = vld [vmem:[%s358 + $0x30] sm:$0xff]
      %v1337 = vld [vmem:[%s358 + $0x38] sm:$0xff]
      %v1338 = vld [vmem:[%s358 + $0x40] sm:$0xff]
      %v1339 = vld [vmem:[%s358 + $0x48] sm:$0xff]
      %v1340 = vld [vmem:[%s358 + $0x50] sm:$0xff]
      %v1341 = vld [vmem:[%s358 + $0x58] sm:$0xff]
      %v1342 = vld [vmem:[%s358 + $0x60] sm:$0xff]
      %v1343 = vld [vmem:[%s358 + $0x68] sm:$0xff]
      %v1344 = vld [vmem:[%s358 + $0x70] sm:$0xff]
      %v1345 = vld [vmem:[%s358 + $0x78] sm:$0xff]
      %v1346 = vmul.f32 %v1299, %v1330
      %v1347 = vmul.f32 %v1301, %v1331
      %v1348 = vmul.f32 %v1303, %v1332
      %v1349 = vmul.f32 %v1305, %v1333
      %v1350 = vmul.f32 %v1307, %v1334
      %v1351 = vmul.f32 %v1309, %v1335
      %v1352 = vmul.f32 %v1311, %v1336
      %v1353 = vmul.f32 %v1313, %v1337
      %v1354 = vmul.f32 %v1315, %v1338
      %v1355 = vmul.f32 %v1317, %v1339
      %v1356 = vmul.f32 %v1319, %v1340
      %v1357 = vmul.f32 %v1321, %v1341
      %v1358 = vmul.f32 %v1323, %v1342
      %v1359 = vmul.f32 %v1325, %v1343
      %v1360 = vmul.f32 %v1327, %v1344
      %v1361 = vmul.f32 %v1329, %v1345
      %v1362 = vadd.f32 %v1220, %v1346
      %v1363 = vadd.f32 %v1224, %v1347
      %v1364 = vadd.f32 %v1230, %v1348
      %v1365 = vadd.f32 %v1234, %v1349
      %v1366 = vadd.f32 %v1240, %v1350
      %v1367 = vadd.f32 %v1244, %v1351
      %v1368 = vadd.f32 %v1250, %v1352
      %v1369 = vadd.f32 %v1254, %v1353
      %v1370 = vadd.f32 %v1260, %v1354
      %v1371 = vadd.f32 %v1264, %v1355
      %v1372 = vadd.f32 %v1270, %v1356
      %v1373 = vadd.f32 %v1274, %v1357
      %v1374 = vadd.f32 %v1280, %v1358
      %v1375 = vadd.f32 %v1284, %v1359
      %v1376 = vadd.f32 %v1290, %v1360
      %v1377 = vadd.f32 %v1294, %v1361
      %1378 = vst [vmem:[%s364] sm:$0xff] %v1362
      %1379 = vst [vmem:[%s364 + $0x8] sm:$0xff] %v1363
      %1380 = vst [vmem:[%s364 + $0x10] sm:$0xff] %v1364
      %1381 = vst [vmem:[%s364 + $0x18] sm:$0xff] %v1365
      %1382 = vst [vmem:[%s364 + $0x20] sm:$0xff] %v1366
      %1383 = vst [vmem:[%s364 + $0x28] sm:$0xff] %v1367
      %1384 = vst [vmem:[%s364 + $0x30] sm:$0xff] %v1368
      %1385 = vst [vmem:[%s364 + $0x38] sm:$0xff] %v1369
      %1386 = vst [vmem:[%s364 + $0x40] sm:$0xff] %v1370
      %1387 = vst [vmem:[%s364 + $0x48] sm:$0xff] %v1371
      %1388 = vst [vmem:[%s364 + $0x50] sm:$0xff] %v1372
      %1389 = vst [vmem:[%s364 + $0x58] sm:$0xff] %v1373
      %1390 = vst [vmem:[%s364 + $0x60] sm:$0xff] %v1374
      %1391 = vst [vmem:[%s364 + $0x68] sm:$0xff] %v1375
      %1392 = vst [vmem:[%s364 + $0x70] sm:$0xff] %v1376
      %1393 = vst [vmem:[%s364 + $0x78] sm:$0xff] %v1377
      %v1394 = vsub.f32 0.0, %v1222
      %v1395 = vsub.f32 0.0, %v1226
      %v1396 = vsub.f32 0.0, %v1232
      %v1397 = vsub.f32 0.0, %v1236
      %v1398 = vsub.f32 0.0, %v1242
      %v1399 = vsub.f32 0.0, %v1246
      %v1400 = vsub.f32 0.0, %v1252
      %v1401 = vsub.f32 0.0, %v1256
      %v1402 = vsub.f32 0.0, %v1262
      %v1403 = vsub.f32 0.0, %v1266
      %v1404 = vsub.f32 0.0, %v1272
      %v1405 = vsub.f32 0.0, %v1276
      %v1406 = vsub.f32 0.0, %v1282
      %v1407 = vsub.f32 0.0, %v1286
      %v1408 = vsub.f32 0.0, %v1292
      %v1409 = vsub.f32 0.0, %v1296
      %v1410 = vmul.f32 %v1362, %v1362
      %v1411 = vmul.f32 %v1363, %v1363
      %v1412 = vmul.f32 %v1364, %v1364
      %v1413 = vmul.f32 %v1365, %v1365
      %v1414 = vmul.f32 %v1366, %v1366
      %v1415 = vmul.f32 %v1367, %v1367
      %v1416 = vmul.f32 %v1368, %v1368
      %v1417 = vmul.f32 %v1369, %v1369
      %v1418 = vmul.f32 %v1370, %v1370
      %v1419 = vmul.f32 %v1371, %v1371
      %v1420 = vmul.f32 %v1372, %v1372
      %v1421 = vmul.f32 %v1373, %v1373
      %v1422 = vmul.f32 %v1374, %v1374
      %v1423 = vmul.f32 %v1375, %v1375
      %v1424 = vmul.f32 %v1376, %v1376
      %v1425 = vmul.f32 %v1377, %v1377
      %v1426 = vmul.f32 %v1330, %v1330
      %v1427 = vmul.f32 %v1331, %v1331
      %v1428 = vmul.f32 %v1332, %v1332
      %v1429 = vmul.f32 %v1333, %v1333
      %v1430 = vmul.f32 %v1334, %v1334
      %v1431 = vmul.f32 %v1335, %v1335
      %v1432 = vmul.f32 %v1336, %v1336
      %v1433 = vmul.f32 %v1337, %v1337
      %v1434 = vmul.f32 %v1338, %v1338
      %v1435 = vmul.f32 %v1339, %v1339
      %v1436 = vmul.f32 %v1340, %v1340
      %v1437 = vmul.f32 %v1341, %v1341
      %v1438 = vmul.f32 %v1342, %v1342
      %v1439 = vmul.f32 %v1343, %v1343
      %v1440 = vmul.f32 %v1344, %v1344
      %v1441 = vmul.f32 %v1345, %v1345
      %v1442 = vsub.f32 %v1410, %v1426
      %v1443 = vsub.f32 %v1411, %v1427
      %v1444 = vsub.f32 %v1412, %v1428
      %v1445 = vsub.f32 %v1413, %v1429
      %v1446 = vsub.f32 %v1414, %v1430
      %v1447 = vsub.f32 %v1415, %v1431
      %v1448 = vsub.f32 %v1416, %v1432
      %v1449 = vsub.f32 %v1417, %v1433
      %v1450 = vsub.f32 %v1418, %v1434
      %v1451 = vsub.f32 %v1419, %v1435
      %v1452 = vsub.f32 %v1420, %v1436
      %v1453 = vsub.f32 %v1421, %v1437
      %v1454 = vsub.f32 %v1422, %v1438
      %v1455 = vsub.f32 %v1423, %v1439
      %v1456 = vsub.f32 %v1424, %v1440
      %v1457 = vsub.f32 %v1425, %v1441
      %v1458 = vmul.f32 %v1442, 0.5
      %v1459 = vmul.f32 %v1443, 0.5
      %v1460 = vmul.f32 %v1444, 0.5
      %v1461 = vmul.f32 %v1445, 0.5
      %v1462 = vmul.f32 %v1446, 0.5
      %v1463 = vmul.f32 %v1447, 0.5
      %v1464 = vmul.f32 %v1448, 0.5
      %v1465 = vmul.f32 %v1449, 0.5
      %v1466 = vmul.f32 %v1450, 0.5
      %v1467 = vmul.f32 %v1451, 0.5
      %v1468 = vmul.f32 %v1452, 0.5
      %v1469 = vmul.f32 %v1453, 0.5
      %v1470 = vmul.f32 %v1454, 0.5
      %v1471 = vmul.f32 %v1455, 0.5
      %v1472 = vmul.f32 %v1456, 0.5
      %v1473 = vmul.f32 %v1457, 0.5
      %v1474 = vadd.f32 %v1394, %v1458
      %v1475 = vadd.f32 %v1395, %v1459
      %v1476 = vadd.f32 %v1396, %v1460
      %v1477 = vadd.f32 %v1397, %v1461
      %v1478 = vadd.f32 %v1398, %v1462
      %v1479 = vadd.f32 %v1399, %v1463
      %v1480 = vadd.f32 %v1400, %v1464
      %v1481 = vadd.f32 %v1401, %v1465
      %v1482 = vadd.f32 %v1402, %v1466
      %v1483 = vadd.f32 %v1403, %v1467
      %v1484 = vadd.f32 %v1404, %v1468
      %v1485 = vadd.f32 %v1405, %v1469
      %v1486 = vadd.f32 %v1406, %v1470
      %v1487 = vadd.f32 %v1407, %v1471
      %v1488 = vadd.f32 %v1408, %v1472
      %v1489 = vadd.f32 %v1409, %v1473
      %1490 = vadd.xlane.f32.xlu0 %v1474
      %v1491 = vpop.xlane.xlu0 %1490
      %1492 = vadd.xlane.f32.xlu0 %v1475
      %v1493 = vpop.xlane.xlu0 %1492
      %1494 = vadd.xlane.f32.xlu0 %v1476
      %v1495 = vpop.xlane.xlu0 %1494
      %1496 = vadd.xlane.f32.xlu0 %v1477
      %v1497 = vpop.xlane.xlu0 %1496
      %1498 = vadd.xlane.f32.xlu0 %v1478
      %v1499 = vpop.xlane.xlu0 %1498
      %1500 = vadd.xlane.f32.xlu0 %v1479
      %v1501 = vpop.xlane.xlu0 %1500
      %1502 = vadd.xlane.f32.xlu0 %v1480
      %v1503 = vpop.xlane.xlu0 %1502
      %1504 = vadd.xlane.f32.xlu0 %v1481
      %v1505 = vpop.xlane.xlu0 %1504
      %1506 = vadd.xlane.f32.xlu0 %v1482
      %v1507 = vpop.xlane.xlu0 %1506
      %1508 = vadd.xlane.f32.xlu0 %v1483
      %v1509 = vpop.xlane.xlu0 %1508
      %1510 = vadd.xlane.f32.xlu0 %v1484
      %v1511 = vpop.xlane.xlu0 %1510
      %1512 = vadd.xlane.f32.xlu0 %v1485
      %v1513 = vpop.xlane.xlu0 %1512
      %1514 = vadd.xlane.f32.xlu0 %v1486
      %v1515 = vpop.xlane.xlu0 %1514
      %1516 = vadd.xlane.f32.xlu0 %v1487
      %v1517 = vpop.xlane.xlu0 %1516
      %1518 = vadd.xlane.f32.xlu0 %v1488
      %v1519 = vpop.xlane.xlu0 %1518
      %1520 = vadd.xlane.f32.xlu0 %v1489
      %v1521 = vpop.xlane.xlu0 %1520
      %vm1522 = vcmask 7168
      %1523 = vst.msk [vmem:[%s370] sm:$0xff] %vm1522, %v1491
      %1524 = vst.msk [vmem:[%s370 + $0x8] sm:$0xff] %vm1522, %v1493
      %1525 = vst.msk [vmem:[%s370 + $0x10] sm:$0xff] %vm1522, %v1495
      %1526 = vst.msk [vmem:[%s370 + $0x18] sm:$0xff] %vm1522, %v1497
      %1527 = vst.msk [vmem:[%s370 + $0x20] sm:$0xff] %vm1522, %v1499
      %1528 = vst.msk [vmem:[%s370 + $0x28] sm:$0xff] %vm1522, %v1501
      %1529 = vst.msk [vmem:[%s370 + $0x30] sm:$0xff] %vm1522, %v1503
      %1530 = vst.msk [vmem:[%s370 + $0x38] sm:$0xff] %vm1522, %v1505
      %1531 = vst.msk [vmem:[%s370 + $0x40] sm:$0xff] %vm1522, %v1507
      %1532 = vst.msk [vmem:[%s370 + $0x48] sm:$0xff] %vm1522, %v1509
      %1533 = vst.msk [vmem:[%s370 + $0x50] sm:$0xff] %vm1522, %v1511
      %1534 = vst.msk [vmem:[%s370 + $0x58] sm:$0xff] %vm1522, %v1513
      %1535 = vst.msk [vmem:[%s370 + $0x60] sm:$0xff] %vm1522, %v1515
      %1536 = vst.msk [vmem:[%s370 + $0x68] sm:$0xff] %vm1522, %v1517
      %1537 = vst.msk [vmem:[%s370 + $0x70] sm:$0xff] %vm1522, %v1519
      %1538 = vst.msk [vmem:[%s370 + $0x78] sm:$0xff] %vm1522, %v1521
      %s1539 = smul.u32 16, %s21
      %p1540 = scmp.lt.s32.totalorder %s1539, 31
      %s1541 = scalar_select %p1540, %s1539, 31
      %s1542 = smul.addr %s1541, 8
      %s1543 = scalar_lea.vmem %s8, %s1542
      %s1544 = smul.u32 16, %s21
      %p1545 = scmp.lt.s32.totalorder %s1544, 31
      %s1546 = scalar_select %p1545, %s1544, 31
      %s1547 = smul.addr %s1546, 8
      %s1548 = scalar_lea.vmem %s9, %s1547
      // Predicated region
      $region53: #{variational_encoder_forward.1} parent=51 // pred_check
        %p1549 = pneg %p217
      $region54: #{variational_encoder_forward.1} parent=51 // pred_check_branch
        %1551 = sbr.rel (%p1549) target = $region56
      $region55: #{variational_encoder_forward.1} parent=51 // pred_region
        %s1552 = smul.u32 16, %s21
      $region56: #{variational_encoder_forward.1} parent=51 // pred_fallthru
        _
      // Predicated region
      $region57: #{variational_encoder_forward.1} parent=51 // pred_check
        %p1553 = pneg %p243
      $region58: #{variational_encoder_forward.1} parent=51 // pred_check_branch
        %1555 = sbr.rel (%p1553) target = $region60
      $region59: #{variational_encoder_forward.1} parent=51 // pred_region
        %s1556 = smul.u32 16, %s21
      $region60: #{variational_encoder_forward.1} parent=51 // pred_fallthru
        _
    $region52: #{variational_encoder_forward.1} parent=5 // pred_fallthru
      _
    %p1557 = scmp.le.s32.totalorder 2, %s16
    // Predicated region
    $region61: #{variational_encoder_forward.1} parent=5 // pred_check
      %p1558 = pneg %p1557
    $region62: #{variational_encoder_forward.1} parent=5 // pred_check_branch
      %1560 = sbr.rel (%p1558) target = $region64
    $region63: #{variational_encoder_forward.1} parent=5 // pred_region
      %s1561 = ssub.s32 %s16, 2
      // Predicated region
      $region65: #{variational_encoder_forward.1} parent=63 // pred_check
        %p1562 = pneg %p223
      $region66: #{variational_encoder_forward.1} parent=63 // pred_check_branch
        %1564 = sbr.rel (%p1562) target = $region68
      $region67: #{variational_encoder_forward.1} parent=63 // pred_region
        %s1565 = smul.u32 16, %s22
        %p1566 = scmp.lt.s32.totalorder %s1565, 31
        %s1567 = scalar_select %p1566, %s1565, 31
        %s1568 = smul.addr %s1567, 8
        %s1569 = scalar_lea.vmem %s8, %s1568
      $region68: #{variational_encoder_forward.1} parent=63 // pred_fallthru
        _
      // Predicated region
      $region69: #{variational_encoder_forward.1} parent=63 // pred_check
        %p1570 = pneg %p249
      $region70: #{variational_encoder_forward.1} parent=63 // pred_check_branch
        %1572 = sbr.rel (%p1570) target = $region72
      $region71: #{variational_encoder_forward.1} parent=63 // pred_region
        %s1573 = smul.u32 16, %s22
        %p1574 = scmp.lt.s32.totalorder %s1573, 31
        %s1575 = scalar_select %p1574, %s1573, 31
        %s1576 = smul.addr %s1575, 8
        %s1577 = scalar_lea.vmem %s9, %s1576
      $region72: #{variational_encoder_forward.1} parent=63 // pred_fallthru
        _
    $region64: #{variational_encoder_forward.1} parent=5 // pred_fallthru
      _
  $region6: #{variational_encoder_forward.1} parent=0 // loop_footer
    %s20 = sadd.s32 1, %s16
  $region7: #{variational_encoder_forward.1} parent=0 // loop_footer_branch
    %15 = sbr.rel target = $region3
  $region8: #{variational_encoder_forward.1} parent=0 // loop_exit
    _

</llo_original>
